<compile_context>
chip_gen: v7x
topology: tpu7x:2x2x1
jax: 0.10.0
libtpu: 0.0.40
codegen_flags: <defaults>
</compile_context>

<pallas_src>
import jax
import jax.numpy as jnp
from jax.experimental import pallas as pl
from jax.experimental.pallas import tpu as pltpu


def _round_up(x, m):
    return ((x + m - 1) // m) * m


# --------------------------------------------------------------------------- kernel
def _encoder_lstm_kernel(x_ref, wih_ref, whh_ref, bias_ref, h_ref, c_ref, xp_ref):
    """One (batch-block, time-chunk) grid step of the LSTM recurrence.

    x_ref   : (Tc, Bblk, D)    time-major input chunk
    wih_ref : (D, 4H)          W_ih^T
    whh_ref : (H, 4H)          W_hh^T
    bias_ref: (1, 4H)          b_ih + b_hh (pre-summed on the host)
    h_ref   : (1, Bblk, H)     hidden state (VMEM-resident carry across time chunks)
    c_ref   : (1, Bblk, H)     cell state   (VMEM-resident carry across time chunks)
    xp_ref  : (Tc, Bblk, 4H)   VMEM scratch for the hoisted input projection
    """
    t_chunk = pl.program_id(1)
    Tc, Bblk, D = x_ref.shape
    H = h_ref.shape[-1]
    G = 4 * H

    # Zero initial state at the first time chunk of each batch block
    # (PyTorch LSTM default when no (h0, c0) is supplied).
    @pl.when(t_chunk == 0)
    def _():
        h_ref[0] = jnp.zeros((Bblk, H), jnp.float32)
        c_ref[0] = jnp.zeros((Bblk, H), jnp.float32)

    wih = wih_ref[...]
    whh = whh_ref[...]
    bias = bias_ref[...]                         # (1, G)

    # Hoisted, chunk-wide input projection: one (Tc*Bblk, D) @ (D, 4H) MXU matmul,
    # staged in VMEM so the serial recurrence only does the small recurrent matmul
    # plus elementwise work per step.  Time-major layout + Bblk % 8 == 0 makes both
    # reshapes layout-trivial (no relayout copy).
    x = x_ref[...]
    xp = jnp.dot(x.reshape(Tc * Bblk, D), wih, preferred_element_type=jnp.float32)
    xp_ref[...] = (xp + bias).reshape(Tc, Bblk, G)

    # Lane mask for the cell-candidate ('g') gate quarter: tanh there, sigmoid
    # elsewhere.  One full-tile tanh + sigmoid + select instead of four
    # sub-128-lane activation slices per step.  Hoisted out of the loop
    # (broadcast_in_dim is not CSE'd by JAX).
    lane = jax.lax.broadcasted_iota(jnp.int32, (Bblk, G), 1)
    g_lanes = (lane >= 2 * H) & (lane < 3 * H)

    def step(t, carry):
        h, c = carry
        gates = xp_ref[t] + jnp.dot(h, whh, preferred_element_type=jnp.float32)
        act = jnp.where(g_lanes, jnp.tanh(gates), jax.nn.sigmoid(gates))
        i_g = act[:, 0 * H:1 * H]
        f_g = act[:, 1 * H:2 * H]
        g_g = act[:, 2 * H:3 * H]
        o_g = act[:, 3 * H:4 * H]
        c = f_g * c + i_g * g_g
        h = o_g * jnp.tanh(c)
        return h, c

    # fori_loop (not a static Python loop) bounds vreg live ranges so Bblk / Tc can
    # grow without spilling; a modest unroll keeps the LLO scheduler fed.
    h, c = jax.lax.fori_loop(0, Tc, step, (h_ref[0], c_ref[0]), unroll=min(8, Tc))

    h_ref[0] = h.astype(h_ref.dtype)
    c_ref[0] = c.astype(c_ref.dtype)


# --------------------------------------------------------------------------- tiling
def _pick_batch_block(b_rounded8):
    """Batch rows per grid step.

    Fill (up to) the 128-row MXU tile; when the batch is large enough, keep at
    least two blocks so v7x's second TensorCore gets work on the 'parallel' axis.
    (For tiny batches the sublane minimum of 8 forces a single block.)
    """
    if b_rounded8 >= 128:
        return min(128, _round_up(-(-b_rounded8 // 2), 8))
    return b_rounded8


def _pick_time_chunk(T, Bblk, D, H, vmem_budget):
    """Largest divisor of T (capped at 256) whose resident footprint fits VMEM."""
    d_lanes = _round_up(max(D, 1), 128)
    g_lanes = _round_up(4 * H, 128)
    h_lanes = _round_up(max(H, 1), 128)
    weights = 2 * 4 * (D * 4 * H + H * 4 * H + 4 * H)      # double-buffered worst case
    state = 2 * 2 * 4 * Bblk * h_lanes                      # h/c output blocks

    def fits(tc):
        x_tile = 2 * 4 * tc * Bblk * d_lanes                # double-buffered x chunk
        xp_scr = 4 * tc * Bblk * g_lanes                    # projection scratch
        return weights + state + x_tile + xp_scr <= vmem_budget

    divisors = sorted({d for d in range(1, T + 1) if T % d == 0 and d <= 256},
                      reverse=True)
    for tc in divisors:
        if fits(tc):
            return tc
    return divisors[-1]


# --------------------------------------------------------------------------- wrapper
def encoder_forward(src, params, *, batch_block=None, time_chunk=None):
    """src: (B, T, D) batch_first input. Returns (hidden, cell), each (1, B, H)."""
    B, T, D = src.shape
    H = params["w_hh_t"].shape[0]
    G = 4 * H

    # ---- tiling choices ----------------------------------------------------
    b8 = _round_up(B, 8)
    Bblk = batch_block if batch_block is not None else _pick_batch_block(b8)
    Bblk = max(8, _round_up(min(Bblk, b8), 8))
    B_pad = _round_up(B, Bblk)

    vmem_budget = 24 * 1024 * 1024
    Tc = time_chunk if time_chunk is not None else _pick_time_chunk(
        T, Bblk, D, H, vmem_budget)
    assert T % Tc == 0, (T, Tc)
    grid = (B_pad // Bblk, T // Tc)

    # ---- host-side layout (one cheap HBM pass, no dtype upcast) ------------
    if B_pad != B:
        src = jnp.pad(src, ((0, B_pad - B), (0, 0), (0, 0)))
    x_tm = jnp.transpose(src, (1, 0, 2))            # (T, B_pad, D) time-major

    # Explicit scoped-VMEM limit with headroom (v5e default is only 16 MiB).
    d_lanes = _round_up(max(D, 1), 128)
    footprint = (2 * 4 * Tc * Bblk * d_lanes
                 + 4 * Tc * Bblk * _round_up(G, 128)
                 + 2 * 4 * (D * G + H * G + G)
                 + 2 * 2 * 4 * Bblk * _round_up(max(H, 1), 128))
    vmem_limit = int(min(64 * 1024 * 1024, max(32 * 1024 * 1024, 2 * footprint)))

    cp_cls = getattr(pltpu, "CompilerParams", None)
    if cp_cls is None:                               # very old jax fallback
        cp_cls = getattr(pltpu, "TPUCompilerParams")
    cparams = cp_cls(
        dimension_semantics=("parallel", "arbitrary"),   # batch parallel, time serial
        vmem_limit_bytes=vmem_limit,
    )

    out_shape = (
        jax.ShapeDtypeStruct((1, B_pad, H), jnp.float32),
        jax.ShapeDtypeStruct((1, B_pad, H), jnp.float32),
    )

    def run(single_buffer_weights):
        wkw = {}
        if single_buffer_weights and hasattr(pl, "Buffered"):
            # Grid-invariant weights: request single buffering instead of the
            # default double buffering (halves their resident VMEM footprint).
            wkw = dict(pipeline_mode=pl.Buffered(1))
        in_specs = [
            pl.BlockSpec((Tc, Bblk, D), lambda b, t: (t, b, 0)),     # x (time-major)
            pl.BlockSpec((D, G), lambda b, t: (0, 0), **wkw),        # W_ih^T
            pl.BlockSpec((H, G), lambda b, t: (0, 0), **wkw),        # W_hh^T
            pl.BlockSpec((1, G), lambda b, t: (0, 0), **wkw),        # b_ih + b_hh
        ]
        out_specs = [
            pl.BlockSpec((1, Bblk, H), lambda b, t: (0, b, 0)),      # hidden (carry)
            pl.BlockSpec((1, Bblk, H), lambda b, t: (0, b, 0)),      # cell   (carry)
        ]
        return pl.pallas_call(
            _encoder_lstm_kernel,
            out_shape=out_shape,
            grid_spec=pltpu.PrefetchScalarGridSpec(
                num_scalar_prefetch=0,
                grid=grid,
                in_specs=in_specs,
                out_specs=out_specs,
                scratch_shapes=[pltpu.VMEM((Tc, Bblk, G), jnp.float32)],
            ),
            compiler_params=cparams,
        )(x_tm, params["w_ih_t"], params["w_hh_t"], params["bias"])

    try:
        hidden, cell = run(True)
    except Exception:
        # pipeline_mode / Buffered(1) not supported by this jax -> default buffering.
        hidden, cell = run(False)

    return hidden[:, :B, :], cell[:, :B, :]


# --------------------------------------------------------------------------- reference
def reference_forward(src, params):
    """Pure-JAX reference of the PyTorch Encoder.forward (returns hidden, cell)."""
    H = params["w_hh_t"].shape[0]
    B = src.shape[0]

    def step(carry, x_t):
        h, c = carry
        gates = x_t @ params["w_ih_t"] + h @ params["w_hh_t"] + params["bias"][0]
        i = jax.nn.sigmoid(gates[:, 0 * H:1 * H])
        f = jax.nn.sigmoid(gates[:, 1 * H:2 * H])
        g = jnp.tanh(gates[:, 2 * H:3 * H])
        o = jax.nn.sigmoid(gates[:, 3 * H:4 * H])
        c_new = f * c + i * g
        h_new = o * jnp.tanh(c_new)
        return (h_new, c_new), None

    h0 = jnp.zeros((B, H), jnp.float32)
    c0 = jnp.zeros((B, H), jnp.float32)
    (h_f, c_f), _ = jax.lax.scan(step, (h0, c0), jnp.transpose(src, (1, 0, 2)))
    return h_f[None], c_f[None]


def init_params(key, input_dim, hidden_dim):
    """PyTorch-LSTM-shaped init (uniform +/- 1/sqrt(H)), pre-transposed weights and
    pre-summed bias for the kernel."""
    ks = jax.random.split(key, 4)
    k = 1.0 / jnp.sqrt(hidden_dim)
    w_ih = jax.random.uniform(ks[0], (4 * hidden_dim, input_dim), jnp.float32, -k, k)
    w_hh = jax.random.uniform(ks[1], (4 * hidden_dim, hidden_dim), jnp.float32, -k, k)
    b_ih = jax.random.uniform(ks[2], (4 * hidden_dim,), jnp.float32, -k, k)
    b_hh = jax.random.uniform(ks[3], (4 * hidden_dim,), jnp.float32, -k, k)
    return {
        "w_ih_t": w_ih.T,                     # (D, 4H)
        "w_hh_t": w_hh.T,                     # (H, 4H)
        "bias": (b_ih + b_hh)[None, :],       # (1, 4H), fused once on the host
    }


if __name__ == "__main__":
    input_dim, hidden_dim = 16, 32
    batch, seq = 4, 8

    key = jax.random.PRNGKey(0)
    k_x, k_p = jax.random.split(key, 2)

    src = jax.random.normal(k_x, (batch, seq, input_dim), jnp.float32)
    params = init_params(k_p, input_dim, hidden_dim)

    hidden, cell = encoder_forward(src, params)
    jax.block_until_ready((hidden, cell))

    h_gold, c_gold = reference_forward(src, params)
    assert hidden.shape == (1, batch, hidden_dim)
    assert cell.shape == (1, batch, hidden_dim)
    assert jnp.allclose(hidden, h_gold, atol=1e-4, rtol=1e-4)
    assert jnp.allclose(cell, c_gold, atol=1e-4, rtol=1e-4)

    print("KERNEL_OK")
</pallas_src>

<mosaic_0001>
module attributes {stable_mosaic.version = 11 : i64} {
  func.func @_encoder_lstm_kernel(%arg0: i32, %arg1: i32, %arg2: memref<8x8x16xf32, #tpu.memory_space<vmem>>, %arg3: memref<16x128xf32, #tpu.memory_space<vmem>>, %arg4: memref<32x128xf32, #tpu.memory_space<vmem>>, %arg5: memref<1x128xf32, #tpu.memory_space<vmem>>, %arg6: memref<1x8x32xf32, #tpu.memory_space<vmem>>, %arg7: memref<1x8x32xf32, #tpu.memory_space<vmem>>, %arg8: memref<8x8x128xf32, #tpu.memory_space<vmem>>) attributes {dimension_semantics = [#tpu.dimension_semantics<parallel>, #tpu.dimension_semantics<arbitrary>], iteration_bounds = array<i64: 1, 1>, scalar_prefetch = 0 : i64, scratch_operands = 1 : i64, tpu.core_type = #tpu.core_type<tc>, window_params = [{transform_indices = @transform_0, window_bounds = array<i64: 8, 8, 16>}, {pipeline_mode = #tpu.pipeline_mode<synchronous>, transform_indices = @transform_1, window_bounds = array<i64: 16, 128>}, {pipeline_mode = #tpu.pipeline_mode<synchronous>, transform_indices = @transform_2, window_bounds = array<i64: 32, 128>}, {pipeline_mode = #tpu.pipeline_mode<synchronous>, transform_indices = @transform_3, window_bounds = array<i64: 1, 128>}, {transform_indices = @transform_4, window_bounds = array<i64: 1, 8, 32>}, {transform_indices = @transform_5, window_bounds = array<i64: 1, 8, 32>}]} {
    %c0_i32 = arith.constant 0 : i32
    %0 = arith.cmpi eq, %arg1, %c0_i32 : i32
    %1 = arith.extui %0 : i1 to i32
    %c0_i32_0 = arith.constant 0 : i32
    %2 = arith.cmpi ne, %1, %c0_i32_0 : i32
    scf.if %2 {
      %cst_57 = arith.constant 0.000000e+00 : f32
      %197 = vector.broadcast %cst_57 : f32 to vector<8x32xf32>
      %c0_58 = arith.constant 0 : index
      %c0_59 = arith.constant 0 : index
      %c0_60 = arith.constant 0 : index
      %198 = vector.load %arg6[%c0_58, %c0_59, %c0_60] : memref<1x8x32xf32, #tpu.memory_space<vmem>>, vector<1x8x32xf32>
      %199 = vector.shape_cast %198 : vector<1x8x32xf32> to vector<8x32xf32>
      %200 = vector.shape_cast %197 : vector<8x32xf32> to vector<1x8x32xf32>
      tpu.vector_store %arg6[%c0_58, %c0_59, %c0_60], %200 {strides = array<i32>} : memref<1x8x32xf32, #tpu.memory_space<vmem>>, vector<1x8x32xf32>,
      %cst_61 = arith.constant 0.000000e+00 : f32
      %201 = vector.broadcast %cst_61 : f32 to vector<8x32xf32>
      %c0_62 = arith.constant 0 : index
      %c0_63 = arith.constant 0 : index
      %c0_64 = arith.constant 0 : index
      %202 = vector.load %arg7[%c0_62, %c0_63, %c0_64] : memref<1x8x32xf32, #tpu.memory_space<vmem>>, vector<1x8x32xf32>
      %203 = vector.shape_cast %202 : vector<1x8x32xf32> to vector<8x32xf32>
      %204 = vector.shape_cast %201 : vector<8x32xf32> to vector<1x8x32xf32>
      tpu.vector_store %arg7[%c0_62, %c0_63, %c0_64], %204 {strides = array<i32>} : memref<1x8x32xf32, #tpu.memory_space<vmem>>, vector<1x8x32xf32>,
    } else {
    }
    %c0 = arith.constant 0 : index
    %c0_1 = arith.constant 0 : index
    %3 = vector.load %arg3[%c0, %c0_1] : memref<16x128xf32, #tpu.memory_space<vmem>>, vector<16x128xf32>
    %c0_2 = arith.constant 0 : index
    %c0_3 = arith.constant 0 : index
    %4 = vector.load %arg4[%c0_2, %c0_3] : memref<32x128xf32, #tpu.memory_space<vmem>>, vector<32x128xf32>
    %c0_4 = arith.constant 0 : index
    %c0_5 = arith.constant 0 : index
    %5 = vector.load %arg5[%c0_4, %c0_5] : memref<1x128xf32, #tpu.memory_space<vmem>>, vector<1x128xf32>
    %c0_6 = arith.constant 0 : index
    %c0_7 = arith.constant 0 : index
    %c0_8 = arith.constant 0 : index
    %6 = vector.load %arg2[%c0_6, %c0_7, %c0_8] : memref<8x8x16xf32, #tpu.memory_space<vmem>>, vector<8x8x16xf32>
    %7 = vector.shape_cast %6 : vector<8x8x16xf32> to vector<64x16xf32>
    %cst = arith.constant dense<0.000000e+00> : vector<64x128xf32>
    %8 = tpu.matmul %7, %3, %cst {dimension_numbers = #tpu.dot_dimension_numbers<[1], [0], [0], [1], [0, 0, 1, 1], [], []>} : vector<64x16xf32>, vector<16x128xf32>, vector<64x128xf32> -> vector<64x128xf32>
    %9 = vector.broadcast %5 : vector<1x128xf32> to vector<64x128xf32>
    %10 = arith.addf %8, %9 : vector<64x128xf32>
    %11 = vector.shape_cast %10 : vector<64x128xf32> to vector<8x8x128xf32>
    %c0_9 = arith.constant 0 : index
    %c0_10 = arith.constant 0 : index
    %c0_11 = arith.constant 0 : index
    %12 = vector.load %arg8[%c0_9, %c0_10, %c0_11] : memref<8x8x128xf32, #tpu.memory_space<vmem>>, vector<8x8x128xf32>
    tpu.vector_store %arg8[%c0_9, %c0_10, %c0_11], %11 {strides = array<i32>} : memref<8x8x128xf32, #tpu.memory_space<vmem>>, vector<8x8x128xf32>,
    %13 = tpu.iota {dimensions = array<i32: 1>} : vector<8x128xi32>
    %c64_i32 = arith.constant 64 : i32
    %14 = vector.broadcast %c64_i32 : i32 to vector<8x128xi32>
    %15 = arith.cmpi sge, %13, %14 : vector<8x128xi32>
    %c96_i32 = arith.constant 96 : i32
    %16 = vector.broadcast %c96_i32 : i32 to vector<8x128xi32>
    %17 = arith.cmpi slt, %13, %16 : vector<8x128xi32>
    %18 = arith.andi %15, %17 : vector<8x128xi1>
    %c0_12 = arith.constant 0 : index
    %c0_13 = arith.constant 0 : index
    %c0_14 = arith.constant 0 : index
    %19 = vector.load %arg6[%c0_12, %c0_13, %c0_14] : memref<1x8x32xf32, #tpu.memory_space<vmem>>, vector<1x8x32xf32>
    %20 = vector.shape_cast %19 : vector<1x8x32xf32> to vector<8x32xf32>
    %c0_15 = arith.constant 0 : index
    %c0_16 = arith.constant 0 : index
    %c0_17 = arith.constant 0 : index
    %21 = vector.load %arg7[%c0_15, %c0_16, %c0_17] : memref<1x8x32xf32, #tpu.memory_space<vmem>>, vector<1x8x32xf32>
    %22 = vector.shape_cast %21 : vector<1x8x32xf32> to vector<8x32xf32>
    %c0_i32_18 = arith.constant 0 : i32
    %23 = arith.index_cast %c0_i32_18 : i32 to index
    %c0_19 = arith.constant 0 : index
    %c0_20 = arith.constant 0 : index
    %24 = vector.load %arg8[%23, %c0_19, %c0_20] : memref<8x8x128xf32, #tpu.memory_space<vmem>>, vector<1x8x128xf32>
    %25 = vector.shape_cast %24 : vector<1x8x128xf32> to vector<8x128xf32>
    %cst_21 = arith.constant dense<0.000000e+00> : vector<8x128xf32>
    %26 = tpu.matmul %20, %4, %cst_21 {dimension_numbers = #tpu.dot_dimension_numbers<[1], [0], [0], [1], [0, 0, 1, 1], [], []>} : vector<8x32xf32>, vector<32x128xf32>, vector<8x128xf32> -> vector<8x128xf32>
    %27 = arith.addf %25, %26 : vector<8x128xf32>
    %28 = math.tanh %27 : vector<8x128xf32>
    %29 = arith.negf %27 : vector<8x128xf32>
    %30 = math.exp %29 : vector<8x128xf32>
    %cst_22 = arith.constant 1.000000e+00 : f32
    %31 = vector.broadcast %cst_22 : f32 to vector<8x128xf32>
    %32 = arith.addf %31, %30 : vector<8x128xf32>
    %33 = arith.divf %31, %32 : vector<8x128xf32>
    %34 = arith.select %18, %28, %33 : vector<8x128xi1>, vector<8x128xf32>
    %35 = vector.extract_strided_slice %34 {offsets = [0, 0], sizes = [8, 32], strides = [1, 1]} : vector<8x128xf32> to vector<8x32xf32>
    %36 = vector.extract_strided_slice %34 {offsets = [0, 32], sizes = [8, 32], strides = [1, 1]} : vector<8x128xf32> to vector<8x32xf32>
    %37 = vector.extract_strided_slice %34 {offsets = [0, 64], sizes = [8, 32], strides = [1, 1]} : vector<8x128xf32> to vector<8x32xf32>
    %38 = vector.extract_strided_slice %34 {offsets = [0, 96], sizes = [8, 32], strides = [1, 1]} : vector<8x128xf32> to vector<8x32xf32>
    %39 = arith.mulf %36, %22 : vector<8x32xf32>
    %40 = arith.mulf %35, %37 : vector<8x32xf32>
    %41 = arith.addf %39, %40 : vector<8x32xf32>
    %42 = math.tanh %41 : vector<8x32xf32>
    %43 = arith.mulf %38, %42 : vector<8x32xf32>
    %c1_i32 = arith.constant 1 : i32
    %44 = arith.index_cast %c1_i32 : i32 to index
    %c0_23 = arith.constant 0 : index
    %c0_24 = arith.constant 0 : index
    %45 = vector.load %arg8[%44, %c0_23, %c0_24] : memref<8x8x128xf32, #tpu.memory_space<vmem>>, vector<1x8x128xf32>
    %46 = vector.shape_cast %45 : vector<1x8x128xf32> to vector<8x128xf32>
    %cst_25 = arith.constant dense<0.000000e+00> : vector<8x128xf32>
    %47 = tpu.matmul %43, %4, %cst_25 {dimension_numbers = #tpu.dot_dimension_numbers<[1], [0], [0], [1], [0, 0, 1, 1], [], []>} : vector<8x32xf32>, vector<32x128xf32>, vector<8x128xf32> -> vector<8x128xf32>
    %48 = arith.addf %46, %47 : vector<8x128xf32>
    %49 = math.tanh %48 : vector<8x128xf32>
    %50 = arith.negf %48 : vector<8x128xf32>
    %51 = math.exp %50 : vector<8x128xf32>
    %cst_26 = arith.constant 1.000000e+00 : f32
    %52 = vector.broadcast %cst_26 : f32 to vector<8x128xf32>
    %53 = arith.addf %52, %51 : vector<8x128xf32>
    %54 = arith.divf %52, %53 : vector<8x128xf32>
    %55 = arith.select %18, %49, %54 : vector<8x128xi1>, vector<8x128xf32>
    %56 = vector.extract_strided_slice %55 {offsets = [0, 0], sizes = [8, 32], strides = [1, 1]} : vector<8x128xf32> to vector<8x32xf32>
    %57 = vector.extract_strided_slice %55 {offsets = [0, 32], sizes = [8, 32], strides = [1, 1]} : vector<8x128xf32> to vector<8x32xf32>
    %58 = vector.extract_strided_slice %55 {offsets = [0, 64], sizes = [8, 32], strides = [1, 1]} : vector<8x128xf32> to vector<8x32xf32>
    %59 = vector.extract_strided_slice %55 {offsets = [0, 96], sizes = [8, 32], strides = [1, 1]} : vector<8x128xf32> to vector<8x32xf32>
    %60 = arith.mulf %57, %41 : vector<8x32xf32>
    %61 = arith.mulf %56, %58 : vector<8x32xf32>
    %62 = arith.addf %60, %61 : vector<8x32xf32>
    %63 = math.tanh %62 : vector<8x32xf32>
    %64 = arith.mulf %59, %63 : vector<8x32xf32>
    %c2_i32 = arith.constant 2 : i32
    %65 = arith.index_cast %c2_i32 : i32 to index
    %c0_27 = arith.constant 0 : index
    %c0_28 = arith.constant 0 : index
    %66 = vector.load %arg8[%65, %c0_27, %c0_28] : memref<8x8x128xf32, #tpu.memory_space<vmem>>, vector<1x8x128xf32>
    %67 = vector.shape_cast %66 : vector<1x8x128xf32> to vector<8x128xf32>
    %cst_29 = arith.constant dense<0.000000e+00> : vector<8x128xf32>
    %68 = tpu.matmul %64, %4, %cst_29 {dimension_numbers = #tpu.dot_dimension_numbers<[1], [0], [0], [1], [0, 0, 1, 1], [], []>} : vector<8x32xf32>, vector<32x128xf32>, vector<8x128xf32> -> vector<8x128xf32>
    %69 = arith.addf %67, %68 : vector<8x128xf32>
    %70 = math.tanh %69 : vector<8x128xf32>
    %71 = arith.negf %69 : vector<8x128xf32>
    %72 = math.exp %71 : vector<8x128xf32>
    %cst_30 = arith.constant 1.000000e+00 : f32
    %73 = vector.broadcast %cst_30 : f32 to vector<8x128xf32>
    %74 = arith.addf %73, %72 : vector<8x128xf32>
    %75 = arith.divf %73, %74 : vector<8x128xf32>
    %76 = arith.select %18, %70, %75 : vector<8x128xi1>, vector<8x128xf32>
    %77 = vector.extract_strided_slice %76 {offsets = [0, 0], sizes = [8, 32], strides = [1, 1]} : vector<8x128xf32> to vector<8x32xf32>
    %78 = vector.extract_strided_slice %76 {offsets = [0, 32], sizes = [8, 32], strides = [1, 1]} : vector<8x128xf32> to vector<8x32xf32>
    %79 = vector.extract_strided_slice %76 {offsets = [0, 64], sizes = [8, 32], strides = [1, 1]} : vector<8x128xf32> to vector<8x32xf32>
    %80 = vector.extract_strided_slice %76 {offsets = [0, 96], sizes = [8, 32], strides = [1, 1]} : vector<8x128xf32> to vector<8x32xf32>
    %81 = arith.mulf %78, %62 : vector<8x32xf32>
    %82 = arith.mulf %77, %79 : vector<8x32xf32>
    %83 = arith.addf %81, %82 : vector<8x32xf32>
    %84 = math.tanh %83 : vector<8x32xf32>
    %85 = arith.mulf %80, %84 : vector<8x32xf32>
    %c3_i32 = arith.constant 3 : i32
    %86 = arith.index_cast %c3_i32 : i32 to index
    %c0_31 = arith.constant 0 : index
    %c0_32 = arith.constant 0 : index
    %87 = vector.load %arg8[%86, %c0_31, %c0_32] : memref<8x8x128xf32, #tpu.memory_space<vmem>>, vector<1x8x128xf32>
    %88 = vector.shape_cast %87 : vector<1x8x128xf32> to vector<8x128xf32>
    %cst_33 = arith.constant dense<0.000000e+00> : vector<8x128xf32>
    %89 = tpu.matmul %85, %4, %cst_33 {dimension_numbers = #tpu.dot_dimension_numbers<[1], [0], [0], [1], [0, 0, 1, 1], [], []>} : vector<8x32xf32>, vector<32x128xf32>, vector<8x128xf32> -> vector<8x128xf32>
    %90 = arith.addf %88, %89 : vector<8x128xf32>
    %91 = math.tanh %90 : vector<8x128xf32>
    %92 = arith.negf %90 : vector<8x128xf32>
    %93 = math.exp %92 : vector<8x128xf32>
    %cst_34 = arith.constant 1.000000e+00 : f32
    %94 = vector.broadcast %cst_34 : f32 to vector<8x128xf32>
    %95 = arith.addf %94, %93 : vector<8x128xf32>
    %96 = arith.divf %94, %95 : vector<8x128xf32>
    %97 = arith.select %18, %91, %96 : vector<8x128xi1>, vector<8x128xf32>
    %98 = vector.extract_strided_slice %97 {offsets = [0, 0], sizes = [8, 32], strides = [1, 1]} : vector<8x128xf32> to vector<8x32xf32>
    %99 = vector.extract_strided_slice %97 {offsets = [0, 32], sizes = [8, 32], strides = [1, 1]} : vector<8x128xf32> to vector<8x32xf32>
    %100 = vector.extract_strided_slice %97 {offsets = [0, 64], sizes = [8, 32], strides = [1, 1]} : vector<8x128xf32> to vector<8x32xf32>
    %101 = vector.extract_strided_slice %97 {offsets = [0, 96], sizes = [8, 32], strides = [1, 1]} : vector<8x128xf32> to vector<8x32xf32>
    %102 = arith.mulf %99, %83 : vector<8x32xf32>
    %103 = arith.mulf %98, %100 : vector<8x32xf32>
    %104 = arith.addf %102, %103 : vector<8x32xf32>
    %105 = math.tanh %104 : vector<8x32xf32>
    %106 = arith.mulf %101, %105 : vector<8x32xf32>
    %c4_i32 = arith.constant 4 : i32
    %107 = arith.index_cast %c4_i32 : i32 to index
    %c0_35 = arith.constant 0 : index
    %c0_36 = arith.constant 0 : index
    %108 = vector.load %arg8[%107, %c0_35, %c0_36] : memref<8x8x128xf32, #tpu.memory_space<vmem>>, vector<1x8x128xf32>
    %109 = vector.shape_cast %108 : vector<1x8x128xf32> to vector<8x128xf32>
    %cst_37 = arith.constant dense<0.000000e+00> : vector<8x128xf32>
    %110 = tpu.matmul %106, %4, %cst_37 {dimension_numbers = #tpu.dot_dimension_numbers<[1], [0], [0], [1], [0, 0, 1, 1], [], []>} : vector<8x32xf32>, vector<32x128xf32>, vector<8x128xf32> -> vector<8x128xf32>
    %111 = arith.addf %109, %110 : vector<8x128xf32>
    %112 = math.tanh %111 : vector<8x128xf32>
    %113 = arith.negf %111 : vector<8x128xf32>
    %114 = math.exp %113 : vector<8x128xf32>
    %cst_38 = arith.constant 1.000000e+00 : f32
    %115 = vector.broadcast %cst_38 : f32 to vector<8x128xf32>
    %116 = arith.addf %115, %114 : vector<8x128xf32>
    %117 = arith.divf %115, %116 : vector<8x128xf32>
    %118 = arith.select %18, %112, %117 : vector<8x128xi1>, vector<8x128xf32>
    %119 = vector.extract_strided_slice %118 {offsets = [0, 0], sizes = [8, 32], strides = [1, 1]} : vector<8x128xf32> to vector<8x32xf32>
    %120 = vector.extract_strided_slice %118 {offsets = [0, 32], sizes = [8, 32], strides = [1, 1]} : vector<8x128xf32> to vector<8x32xf32>
    %121 = vector.extract_strided_slice %118 {offsets = [0, 64], sizes = [8, 32], strides = [1, 1]} : vector<8x128xf32> to vector<8x32xf32>
    %122 = vector.extract_strided_slice %118 {offsets = [0, 96], sizes = [8, 32], strides = [1, 1]} : vector<8x128xf32> to vector<8x32xf32>
    %123 = arith.mulf %120, %104 : vector<8x32xf32>
    %124 = arith.mulf %119, %121 : vector<8x32xf32>
    %125 = arith.addf %123, %124 : vector<8x32xf32>
    %126 = math.tanh %125 : vector<8x32xf32>
    %127 = arith.mulf %122, %126 : vector<8x32xf32>
    %c5_i32 = arith.constant 5 : i32
    %128 = arith.index_cast %c5_i32 : i32 to index
    %c0_39 = arith.constant 0 : index
    %c0_40 = arith.constant 0 : index
    %129 = vector.load %arg8[%128, %c0_39, %c0_40] : memref<8x8x128xf32, #tpu.memory_space<vmem>>, vector<1x8x128xf32>
    %130 = vector.shape_cast %129 : vector<1x8x128xf32> to vector<8x128xf32>
    %cst_41 = arith.constant dense<0.000000e+00> : vector<8x128xf32>
    %131 = tpu.matmul %127, %4, %cst_41 {dimension_numbers = #tpu.dot_dimension_numbers<[1], [0], [0], [1], [0, 0, 1, 1], [], []>} : vector<8x32xf32>, vector<32x128xf32>, vector<8x128xf32> -> vector<8x128xf32>
    %132 = arith.addf %130, %131 : vector<8x128xf32>
    %133 = math.tanh %132 : vector<8x128xf32>
    %134 = arith.negf %132 : vector<8x128xf32>
    %135 = math.exp %134 : vector<8x128xf32>
    %cst_42 = arith.constant 1.000000e+00 : f32
    %136 = vector.broadcast %cst_42 : f32 to vector<8x128xf32>
    %137 = arith.addf %136, %135 : vector<8x128xf32>
    %138 = arith.divf %136, %137 : vector<8x128xf32>
    %139 = arith.select %18, %133, %138 : vector<8x128xi1>, vector<8x128xf32>
    %140 = vector.extract_strided_slice %139 {offsets = [0, 0], sizes = [8, 32], strides = [1, 1]} : vector<8x128xf32> to vector<8x32xf32>
    %141 = vector.extract_strided_slice %139 {offsets = [0, 32], sizes = [8, 32], strides = [1, 1]} : vector<8x128xf32> to vector<8x32xf32>
    %142 = vector.extract_strided_slice %139 {offsets = [0, 64], sizes = [8, 32], strides = [1, 1]} : vector<8x128xf32> to vector<8x32xf32>
    %143 = vector.extract_strided_slice %139 {offsets = [0, 96], sizes = [8, 32], strides = [1, 1]} : vector<8x128xf32> to vector<8x32xf32>
    %144 = arith.mulf %141, %125 : vector<8x32xf32>
    %145 = arith.mulf %140, %142 : vector<8x32xf32>
    %146 = arith.addf %144, %145 : vector<8x32xf32>
    %147 = math.tanh %146 : vector<8x32xf32>
    %148 = arith.mulf %143, %147 : vector<8x32xf32>
    %c6_i32 = arith.constant 6 : i32
    %149 = arith.index_cast %c6_i32 : i32 to index
    %c0_43 = arith.constant 0 : index
    %c0_44 = arith.constant 0 : index
    %150 = vector.load %arg8[%149, %c0_43, %c0_44] : memref<8x8x128xf32, #tpu.memory_space<vmem>>, vector<1x8x128xf32>
    %151 = vector.shape_cast %150 : vector<1x8x128xf32> to vector<8x128xf32>
    %cst_45 = arith.constant dense<0.000000e+00> : vector<8x128xf32>
    %152 = tpu.matmul %148, %4, %cst_45 {dimension_numbers = #tpu.dot_dimension_numbers<[1], [0], [0], [1], [0, 0, 1, 1], [], []>} : vector<8x32xf32>, vector<32x128xf32>, vector<8x128xf32> -> vector<8x128xf32>
    %153 = arith.addf %151, %152 : vector<8x128xf32>
    %154 = math.tanh %153 : vector<8x128xf32>
    %155 = arith.negf %153 : vector<8x128xf32>
    %156 = math.exp %155 : vector<8x128xf32>
    %cst_46 = arith.constant 1.000000e+00 : f32
    %157 = vector.broadcast %cst_46 : f32 to vector<8x128xf32>
    %158 = arith.addf %157, %156 : vector<8x128xf32>
    %159 = arith.divf %157, %158 : vector<8x128xf32>
    %160 = arith.select %18, %154, %159 : vector<8x128xi1>, vector<8x128xf32>
    %161 = vector.extract_strided_slice %160 {offsets = [0, 0], sizes = [8, 32], strides = [1, 1]} : vector<8x128xf32> to vector<8x32xf32>
    %162 = vector.extract_strided_slice %160 {offsets = [0, 32], sizes = [8, 32], strides = [1, 1]} : vector<8x128xf32> to vector<8x32xf32>
    %163 = vector.extract_strided_slice %160 {offsets = [0, 64], sizes = [8, 32], strides = [1, 1]} : vector<8x128xf32> to vector<8x32xf32>
    %164 = vector.extract_strided_slice %160 {offsets = [0, 96], sizes = [8, 32], strides = [1, 1]} : vector<8x128xf32> to vector<8x32xf32>
    %165 = arith.mulf %162, %146 : vector<8x32xf32>
    %166 = arith.mulf %161, %163 : vector<8x32xf32>
    %167 = arith.addf %165, %166 : vector<8x32xf32>
    %168 = math.tanh %167 : vector<8x32xf32>
    %169 = arith.mulf %164, %168 : vector<8x32xf32>
    %c7_i32 = arith.constant 7 : i32
    %170 = arith.index_cast %c7_i32 : i32 to index
    %c0_47 = arith.constant 0 : index
    %c0_48 = arith.constant 0 : index
    %171 = vector.load %arg8[%170, %c0_47, %c0_48] : memref<8x8x128xf32, #tpu.memory_space<vmem>>, vector<1x8x128xf32>
    %172 = vector.shape_cast %171 : vector<1x8x128xf32> to vector<8x128xf32>
    %cst_49 = arith.constant dense<0.000000e+00> : vector<8x128xf32>
    %173 = tpu.matmul %169, %4, %cst_49 {dimension_numbers = #tpu.dot_dimension_numbers<[1], [0], [0], [1], [0, 0, 1, 1], [], []>} : vector<8x32xf32>, vector<32x128xf32>, vector<8x128xf32> -> vector<8x128xf32>
    %174 = arith.addf %172, %173 : vector<8x128xf32>
    %175 = math.tanh %174 : vector<8x128xf32>
    %176 = arith.negf %174 : vector<8x128xf32>
    %177 = math.exp %176 : vector<8x128xf32>
    %cst_50 = arith.constant 1.000000e+00 : f32
    %178 = vector.broadcast %cst_50 : f32 to vector<8x128xf32>
    %179 = arith.addf %178, %177 : vector<8x128xf32>
    %180 = arith.divf %178, %179 : vector<8x128xf32>
    %181 = arith.select %18, %175, %180 : vector<8x128xi1>, vector<8x128xf32>
    %182 = vector.extract_strided_slice %181 {offsets = [0, 0], sizes = [8, 32], strides = [1, 1]} : vector<8x128xf32> to vector<8x32xf32>
    %183 = vector.extract_strided_slice %181 {offsets = [0, 32], sizes = [8, 32], strides = [1, 1]} : vector<8x128xf32> to vector<8x32xf32>
    %184 = vector.extract_strided_slice %181 {offsets = [0, 64], sizes = [8, 32], strides = [1, 1]} : vector<8x128xf32> to vector<8x32xf32>
    %185 = vector.extract_strided_slice %181 {offsets = [0, 96], sizes = [8, 32], strides = [1, 1]} : vector<8x128xf32> to vector<8x32xf32>
    %186 = arith.mulf %183, %167 : vector<8x32xf32>
    %187 = arith.mulf %182, %184 : vector<8x32xf32>
    %188 = arith.addf %186, %187 : vector<8x32xf32>
    %189 = math.tanh %188 : vector<8x32xf32>
    %190 = arith.mulf %185, %189 : vector<8x32xf32>
    %c8_i32 = arith.constant 8 : i32
    %c0_51 = arith.constant 0 : index
    %c0_52 = arith.constant 0 : index
    %c0_53 = arith.constant 0 : index
    %191 = vector.load %arg6[%c0_51, %c0_52, %c0_53] : memref<1x8x32xf32, #tpu.memory_space<vmem>>, vector<1x8x32xf32>
    %192 = vector.shape_cast %191 : vector<1x8x32xf32> to vector<8x32xf32>
    %193 = vector.shape_cast %190 : vector<8x32xf32> to vector<1x8x32xf32>
    tpu.vector_store %arg6[%c0_51, %c0_52, %c0_53], %193 {strides = array<i32>} : memref<1x8x32xf32, #tpu.memory_space<vmem>>, vector<1x8x32xf32>,
    %c0_54 = arith.constant 0 : index
    %c0_55 = arith.constant 0 : index
    %c0_56 = arith.constant 0 : index
    %194 = vector.load %arg7[%c0_54, %c0_55, %c0_56] : memref<1x8x32xf32, #tpu.memory_space<vmem>>, vector<1x8x32xf32>
    %195 = vector.shape_cast %194 : vector<1x8x32xf32> to vector<8x32xf32>
    %196 = vector.shape_cast %188 : vector<8x32xf32> to vector<1x8x32xf32>
    tpu.vector_store %arg7[%c0_54, %c0_55, %c0_56], %196 {strides = array<i32>} : memref<1x8x32xf32, #tpu.memory_space<vmem>>, vector<1x8x32xf32>,
    return
  }
  func.func @transform_0(%arg0: i32, %arg1: i32) -> (i32, i32, i32) {
    %c0_i32 = arith.constant 0 : i32
    %c0_i32_0 = arith.constant 0 : i32
    return %arg1, %arg0, %c0_i32 : i32, i32, i32
  }
  func.func @transform_1(%arg0: i32, %arg1: i32) -> (i32, i32) {
    %c0_i32 = arith.constant 0 : i32
    %c0_i32_0 = arith.constant 0 : i32
    %c0_i32_1 = arith.constant 0 : i32
    return %c0_i32, %c0_i32_0 : i32, i32
  }
  func.func @transform_2(%arg0: i32, %arg1: i32) -> (i32, i32) {
    %c0_i32 = arith.constant 0 : i32
    %c0_i32_0 = arith.constant 0 : i32
    %c0_i32_1 = arith.constant 0 : i32
    return %c0_i32, %c0_i32_0 : i32, i32
  }
  func.func @transform_3(%arg0: i32, %arg1: i32) -> (i32, i32) {
    %c0_i32 = arith.constant 0 : i32
    %c0_i32_0 = arith.constant 0 : i32
    %c0_i32_1 = arith.constant 0 : i32
    return %c0_i32, %c0_i32_0 : i32, i32
  }
  func.func @transform_4(%arg0: i32, %arg1: i32) -> (i32, i32, i32) {
    %c0_i32 = arith.constant 0 : i32
    %c0_i32_0 = arith.constant 0 : i32
    %c0_i32_1 = arith.constant 0 : i32
    return %c0_i32, %arg0, %c0_i32_0 : i32, i32, i32
  }
  func.func @transform_5(%arg0: i32, %arg1: i32) -> (i32, i32, i32) {
    %c0_i32 = arith.constant 0 : i32
    %c0_i32_0 = arith.constant 0 : i32
    %c0_i32_1 = arith.constant 0 : i32
    return %c0_i32, %arg0, %c0_i32_0 : i32, i32, i32
  }
}

module attributes {stable_mosaic.version = 11 : i64} {
  func.func @_encoder_lstm_kernel(%arg0: i32, %arg1: i32, %arg2: memref<8x8x16xf32, #tpu.memory_space<vmem>>, %arg3: memref<16x128xf32, #tpu.memory_space<vmem>>, %arg4: memref<32x128xf32, #tpu.memory_space<vmem>>, %arg5: memref<1x128xf32, #tpu.memory_space<vmem>>, %arg6: memref<1x8x32xf32, #tpu.memory_space<vmem>>, %arg7: memref<1x8x32xf32, #tpu.memory_space<vmem>>, %arg8: memref<8x8x128xf32, #tpu.memory_space<vmem>>) attributes {dimension_semantics = [#tpu.dimension_semantics<parallel>, #tpu.dimension_semantics<arbitrary>], iteration_bounds = array<i64: 1, 1>, scalar_prefetch = 0 : i64, scratch_operands = 1 : i64, tpu.core_type = #tpu.core_type<tc>, window_params = [{transform_indices = @transform_0, window_bounds = array<i64: 8, 8, 16>}, {pipeline_mode = #tpu.pipeline_mode<synchronous>, transform_indices = @transform_1, window_bounds = array<i64: 16, 128>}, {pipeline_mode = #tpu.pipeline_mode<synchronous>, transform_indices = @transform_2, window_bounds = array<i64: 32, 128>}, {pipeline_mode = #tpu.pipeline_mode<synchronous>, transform_indices = @transform_3, window_bounds = array<i64: 1, 128>}, {transform_indices = @transform_4, window_bounds = array<i64: 1, 8, 32>}, {transform_indices = @transform_5, window_bounds = array<i64: 1, 8, 32>}]} {
    %c0_i32 = arith.constant 0 : i32
    %0 = arith.cmpi eq, %arg1, %c0_i32 : i32
    %1 = arith.extui %0 : i1 to i32
    %c0_i32_0 = arith.constant 0 : i32
    %2 = arith.cmpi ne, %1, %c0_i32_0 : i32
    scf.if %2 {
      %cst_57 = arith.constant 0.000000e+00 : f32
      %197 = vector.broadcast %cst_57 : f32 to vector<8x32xf32>
      %c0_58 = arith.constant 0 : index
      %c0_59 = arith.constant 0 : index
      %c0_60 = arith.constant 0 : index
      %198 = vector.load %arg6[%c0_58, %c0_59, %c0_60] : memref<1x8x32xf32, #tpu.memory_space<vmem>>, vector<1x8x32xf32>
      %199 = vector.shape_cast %198 : vector<1x8x32xf32> to vector<8x32xf32>
      %200 = vector.shape_cast %197 : vector<8x32xf32> to vector<1x8x32xf32>
      tpu.vector_store %arg6[%c0_58, %c0_59, %c0_60], %200 {strides = array<i32>} : memref<1x8x32xf32, #tpu.memory_space<vmem>>, vector<1x8x32xf32>,
      %cst_61 = arith.constant 0.000000e+00 : f32
      %201 = vector.broadcast %cst_61 : f32 to vector<8x32xf32>
      %c0_62 = arith.constant 0 : index
      %c0_63 = arith.constant 0 : index
      %c0_64 = arith.constant 0 : index
      %202 = vector.load %arg7[%c0_62, %c0_63, %c0_64] : memref<1x8x32xf32, #tpu.memory_space<vmem>>, vector<1x8x32xf32>
      %203 = vector.shape_cast %202 : vector<1x8x32xf32> to vector<8x32xf32>
      %204 = vector.shape_cast %201 : vector<8x32xf32> to vector<1x8x32xf32>
      tpu.vector_store %arg7[%c0_62, %c0_63, %c0_64], %204 {strides = array<i32>} : memref<1x8x32xf32, #tpu.memory_space<vmem>>, vector<1x8x32xf32>,
    } else {
    }
    %c0 = arith.constant 0 : index
    %c0_1 = arith.constant 0 : index
    %3 = vector.load %arg3[%c0, %c0_1] : memref<16x128xf32, #tpu.memory_space<vmem>>, vector<16x128xf32>
    %c0_2 = arith.constant 0 : index
    %c0_3 = arith.constant 0 : index
    %4 = vector.load %arg4[%c0_2, %c0_3] : memref<32x128xf32, #tpu.memory_space<vmem>>, vector<32x128xf32>
    %c0_4 = arith.constant 0 : index
    %c0_5 = arith.constant 0 : index
    %5 = vector.load %arg5[%c0_4, %c0_5] : memref<1x128xf32, #tpu.memory_space<vmem>>, vector<1x128xf32>
    %c0_6 = arith.constant 0 : index
    %c0_7 = arith.constant 0 : index
    %c0_8 = arith.constant 0 : index
    %6 = vector.load %arg2[%c0_6, %c0_7, %c0_8] : memref<8x8x16xf32, #tpu.memory_space<vmem>>, vector<8x8x16xf32>
    %7 = vector.shape_cast %6 : vector<8x8x16xf32> to vector<64x16xf32>
    %cst = arith.constant dense<0.000000e+00> : vector<64x128xf32>
    %8 = tpu.matmul %7, %3, %cst {dimension_numbers = #tpu.dot_dimension_numbers<[1], [0], [0], [1], [0, 0, 1, 1], [], []>} : vector<64x16xf32>, vector<16x128xf32>, vector<64x128xf32> -> vector<64x128xf32>
    %9 = vector.broadcast %5 : vector<1x128xf32> to vector<64x128xf32>
    %10 = arith.addf %8, %9 : vector<64x128xf32>
    %11 = vector.shape_cast %10 : vector<64x128xf32> to vector<8x8x128xf32>
    %c0_9 = arith.constant 0 : index
    %c0_10 = arith.constant 0 : index
    %c0_11 = arith.constant 0 : index
    %12 = vector.load %arg8[%c0_9, %c0_10, %c0_11] : memref<8x8x128xf32, #tpu.memory_space<vmem>>, vector<8x8x128xf32>
    tpu.vector_store %arg8[%c0_9, %c0_10, %c0_11], %11 {strides = array<i32>} : memref<8x8x128xf32, #tpu.memory_space<vmem>>, vector<8x8x128xf32>,
    %13 = tpu.iota {dimensions = array<i32: 1>} : vector<8x128xi32>
    %c64_i32 = arith.constant 64 : i32
    %14 = vector.broadcast %c64_i32 : i32 to vector<8x128xi32>
    %15 = arith.cmpi sge, %13, %14 : vector<8x128xi32>
    %c96_i32 = arith.constant 96 : i32
    %16 = vector.broadcast %c96_i32 : i32 to vector<8x128xi32>
    %17 = arith.cmpi slt, %13, %16 : vector<8x128xi32>
    %18 = arith.andi %15, %17 : vector<8x128xi1>
    %c0_12 = arith.constant 0 : index
    %c0_13 = arith.constant 0 : index
    %c0_14 = arith.constant 0 : index
    %19 = vector.load %arg6[%c0_12, %c0_13, %c0_14] : memref<1x8x32xf32, #tpu.memory_space<vmem>>, vector<1x8x32xf32>
    %20 = vector.shape_cast %19 : vector<1x8x32xf32> to vector<8x32xf32>
    %c0_15 = arith.constant 0 : index
    %c0_16 = arith.constant 0 : index
    %c0_17 = arith.constant 0 : index
    %21 = vector.load %arg7[%c0_15, %c0_16, %c0_17] : memref<1x8x32xf32, #tpu.memory_space<vmem>>, vector<1x8x32xf32>
    %22 = vector.shape_cast %21 : vector<1x8x32xf32> to vector<8x32xf32>
    %c0_i32_18 = arith.constant 0 : i32
    %23 = arith.index_cast %c0_i32_18 : i32 to index
    %c0_19 = arith.constant 0 : index
    %c0_20 = arith.constant 0 : index
    %24 = vector.load %arg8[%23, %c0_19, %c0_20] : memref<8x8x128xf32, #tpu.memory_space<vmem>>, vector<1x8x128xf32>
    %25 = vector.shape_cast %24 : vector<1x8x128xf32> to vector<8x128xf32>
    %cst_21 = arith.constant dense<0.000000e+00> : vector<8x128xf32>
    %26 = tpu.matmul %20, %4, %cst_21 {dimension_numbers = #tpu.dot_dimension_numbers<[1], [0], [0], [1], [0, 0, 1, 1], [], []>} : vector<8x32xf32>, vector<32x128xf32>, vector<8x128xf32> -> vector<8x128xf32>
    %27 = arith.addf %25, %26 : vector<8x128xf32>
    %28 = math.tanh %27 : vector<8x128xf32>
    %29 = arith.negf %27 : vector<8x128xf32>
    %30 = math.exp %29 : vector<8x128xf32>
    %cst_22 = arith.constant 1.000000e+00 : f32
    %31 = vector.broadcast %cst_22 : f32 to vector<8x128xf32>
    %32 = arith.addf %31, %30 : vector<8x128xf32>
    %33 = arith.divf %31, %32 : vector<8x128xf32>
    %34 = arith.select %18, %28, %33 : vector<8x128xi1>, vector<8x128xf32>
    %35 = vector.extract_strided_slice %34 {offsets = [0, 0], sizes = [8, 32], strides = [1, 1]} : vector<8x128xf32> to vector<8x32xf32>
    %36 = vector.extract_strided_slice %34 {offsets = [0, 32], sizes = [8, 32], strides = [1, 1]} : vector<8x128xf32> to vector<8x32xf32>
    %37 = vector.extract_strided_slice %34 {offsets = [0, 64], sizes = [8, 32], strides = [1, 1]} : vector<8x128xf32> to vector<8x32xf32>
    %38 = vector.extract_strided_slice %34 {offsets = [0, 96], sizes = [8, 32], strides = [1, 1]} : vector<8x128xf32> to vector<8x32xf32>
    %39 = arith.mulf %36, %22 : vector<8x32xf32>
    %40 = arith.mulf %35, %37 : vector<8x32xf32>
    %41 = arith.addf %39, %40 : vector<8x32xf32>
    %42 = math.tanh %41 : vector<8x32xf32>
    %43 = arith.mulf %38, %42 : vector<8x32xf32>
    %c1_i32 = arith.constant 1 : i32
    %44 = arith.index_cast %c1_i32 : i32 to index
    %c0_23 = arith.constant 0 : index
    %c0_24 = arith.constant 0 : index
    %45 = vector.load %arg8[%44, %c0_23, %c0_24] : memref<8x8x128xf32, #tpu.memory_space<vmem>>, vector<1x8x128xf32>
    %46 = vector.shape_cast %45 : vector<1x8x128xf32> to vector<8x128xf32>
    %cst_25 = arith.constant dense<0.000000e+00> : vector<8x128xf32>
    %47 = tpu.matmul %43, %4, %cst_25 {dimension_numbers = #tpu.dot_dimension_numbers<[1], [0], [0], [1], [0, 0, 1, 1], [], []>} : vector<8x32xf32>, vector<32x128xf32>, vector<8x128xf32> -> vector<8x128xf32>
    %48 = arith.addf %46, %47 : vector<8x128xf32>
    %49 = math.tanh %48 : vector<8x128xf32>
    %50 = arith.negf %48 : vector<8x128xf32>
    %51 = math.exp %50 : vector<8x128xf32>
    %cst_26 = arith.constant 1.000000e+00 : f32
    %52 = vector.broadcast %cst_26 : f32 to vector<8x128xf32>
    %53 = arith.addf %52, %51 : vector<8x128xf32>
    %54 = arith.divf %52, %53 : vector<8x128xf32>
    %55 = arith.select %18, %49, %54 : vector<8x128xi1>, vector<8x128xf32>
    %56 = vector.extract_strided_slice %55 {offsets = [0, 0], sizes = [8, 32], strides = [1, 1]} : vector<8x128xf32> to vector<8x32xf32>
    %57 = vector.extract_strided_slice %55 {offsets = [0, 32], sizes = [8, 32], strides = [1, 1]} : vector<8x128xf32> to vector<8x32xf32>
    %58 = vector.extract_strided_slice %55 {offsets = [0, 64], sizes = [8, 32], strides = [1, 1]} : vector<8x128xf32> to vector<8x32xf32>
    %59 = vector.extract_strided_slice %55 {offsets = [0, 96], sizes = [8, 32], strides = [1, 1]} : vector<8x128xf32> to vector<8x32xf32>
    %60 = arith.mulf %57, %41 : vector<8x32xf32>
    %61 = arith.mulf %56, %58 : vector<8x32xf32>
    %62 = arith.addf %60, %61 : vector<8x32xf32>
    %63 = math.tanh %62 : vector<8x32xf32>
    %64 = arith.mulf %59, %63 : vector<8x32xf32>
    %c2_i32 = arith.constant 2 : i32
    %65 = arith.index_cast %c2_i32 : i32 to index
    %c0_27 = arith.constant 0 : index
    %c0_28 = arith.constant 0 : index
    %66 = vector.load %arg8[%65, %c0_27, %c0_28] : memref<8x8x128xf32, #tpu.memory_space<vmem>>, vector<1x8x128xf32>
    %67 = vector.shape_cast %66 : vector<1x8x128xf32> to vector<8x128xf32>
    %cst_29 = arith.constant dense<0.000000e+00> : vector<8x128xf32>
    %68 = tpu.matmul %64, %4, %cst_29 {dimension_numbers = #tpu.dot_dimension_numbers<[1], [0], [0], [1], [0, 0, 1, 1], [], []>} : vector<8x32xf32>, vector<32x128xf32>, vector<8x128xf32> -> vector<8x128xf32>
    %69 = arith.addf %67, %68 : vector<8x128xf32>
    %70 = math.tanh %69 : vector<8x128xf32>
    %71 = arith.negf %69 : vector<8x128xf32>
    %72 = math.exp %71 : vector<8x128xf32>
    %cst_30 = arith.constant 1.000000e+00 : f32
    %73 = vector.broadcast %cst_30 : f32 to vector<8x128xf32>
    %74 = arith.addf %73, %72 : vector<8x128xf32>
    %75 = arith.divf %73, %74 : vector<8x128xf32>
    %76 = arith.select %18, %70, %75 : vector<8x128xi1>, vector<8x128xf32>
    %77 = vector.extract_strided_slice %76 {offsets = [0, 0], sizes = [8, 32], strides = [1, 1]} : vector<8x128xf32> to vector<8x32xf32>
    %78 = vector.extract_strided_slice %76 {offsets = [0, 32], sizes = [8, 32], strides = [1, 1]} : vector<8x128xf32> to vector<8x32xf32>
    %79 = vector.extract_strided_slice %76 {offsets = [0, 64], sizes = [8, 32], strides = [1, 1]} : vector<8x128xf32> to vector<8x32xf32>
    %80 = vector.extract_strided_slice %76 {offsets = [0, 96], sizes = [8, 32], strides = [1, 1]} : vector<8x128xf32> to vector<8x32xf32>
    %81 = arith.mulf %78, %62 : vector<8x32xf32>
    %82 = arith.mulf %77, %79 : vector<8x32xf32>
    %83 = arith.addf %81, %82 : vector<8x32xf32>
    %84 = math.tanh %83 : vector<8x32xf32>
    %85 = arith.mulf %80, %84 : vector<8x32xf32>
    %c3_i32 = arith.constant 3 : i32
    %86 = arith.index_cast %c3_i32 : i32 to index
    %c0_31 = arith.constant 0 : index
    %c0_32 = arith.constant 0 : index
    %87 = vector.load %arg8[%86, %c0_31, %c0_32] : memref<8x8x128xf32, #tpu.memory_space<vmem>>, vector<1x8x128xf32>
    %88 = vector.shape_cast %87 : vector<1x8x128xf32> to vector<8x128xf32>
    %cst_33 = arith.constant dense<0.000000e+00> : vector<8x128xf32>
    %89 = tpu.matmul %85, %4, %cst_33 {dimension_numbers = #tpu.dot_dimension_numbers<[1], [0], [0], [1], [0, 0, 1, 1], [], []>} : vector<8x32xf32>, vector<32x128xf32>, vector<8x128xf32> -> vector<8x128xf32>
    %90 = arith.addf %88, %89 : vector<8x128xf32>
    %91 = math.tanh %90 : vector<8x128xf32>
    %92 = arith.negf %90 : vector<8x128xf32>
    %93 = math.exp %92 : vector<8x128xf32>
    %cst_34 = arith.constant 1.000000e+00 : f32
    %94 = vector.broadcast %cst_34 : f32 to vector<8x128xf32>
    %95 = arith.addf %94, %93 : vector<8x128xf32>
    %96 = arith.divf %94, %95 : vector<8x128xf32>
    %97 = arith.select %18, %91, %96 : vector<8x128xi1>, vector<8x128xf32>
    %98 = vector.extract_strided_slice %97 {offsets = [0, 0], sizes = [8, 32], strides = [1, 1]} : vector<8x128xf32> to vector<8x32xf32>
    %99 = vector.extract_strided_slice %97 {offsets = [0, 32], sizes = [8, 32], strides = [1, 1]} : vector<8x128xf32> to vector<8x32xf32>
    %100 = vector.extract_strided_slice %97 {offsets = [0, 64], sizes = [8, 32], strides = [1, 1]} : vector<8x128xf32> to vector<8x32xf32>
    %101 = vector.extract_strided_slice %97 {offsets = [0, 96], sizes = [8, 32], strides = [1, 1]} : vector<8x128xf32> to vector<8x32xf32>
    %102 = arith.mulf %99, %83 : vector<8x32xf32>
    %103 = arith.mulf %98, %100 : vector<8x32xf32>
    %104 = arith.addf %102, %103 : vector<8x32xf32>
    %105 = math.tanh %104 : vector<8x32xf32>
    %106 = arith.mulf %101, %105 : vector<8x32xf32>
    %c4_i32 = arith.constant 4 : i32
    %107 = arith.index_cast %c4_i32 : i32 to index
    %c0_35 = arith.constant 0 : index
    %c0_36 = arith.constant 0 : index
    %108 = vector.load %arg8[%107, %c0_35, %c0_36] : memref<8x8x128xf32, #tpu.memory_space<vmem>>, vector<1x8x128xf32>
    %109 = vector.shape_cast %108 : vector<1x8x128xf32> to vector<8x128xf32>
    %cst_37 = arith.constant dense<0.000000e+00> : vector<8x128xf32>
    %110 = tpu.matmul %106, %4, %cst_37 {dimension_numbers = #tpu.dot_dimension_numbers<[1], [0], [0], [1], [0, 0, 1, 1], [], []>} : vector<8x32xf32>, vector<32x128xf32>, vector<8x128xf32> -> vector<8x128xf32>
    %111 = arith.addf %109, %110 : vector<8x128xf32>
    %112 = math.tanh %111 : vector<8x128xf32>
    %113 = arith.negf %111 : vector<8x128xf32>
    %114 = math.exp %113 : vector<8x128xf32>
    %cst_38 = arith.constant 1.000000e+00 : f32
    %115 = vector.broadcast %cst_38 : f32 to vector<8x128xf32>
    %116 = arith.addf %115, %114 : vector<8x128xf32>
    %117 = arith.divf %115, %116 : vector<8x128xf32>
    %118 = arith.select %18, %112, %117 : vector<8x128xi1>, vector<8x128xf32>
    %119 = vector.extract_strided_slice %118 {offsets = [0, 0], sizes = [8, 32], strides = [1, 1]} : vector<8x128xf32> to vector<8x32xf32>
    %120 = vector.extract_strided_slice %118 {offsets = [0, 32], sizes = [8, 32], strides = [1, 1]} : vector<8x128xf32> to vector<8x32xf32>
    %121 = vector.extract_strided_slice %118 {offsets = [0, 64], sizes = [8, 32], strides = [1, 1]} : vector<8x128xf32> to vector<8x32xf32>
    %122 = vector.extract_strided_slice %118 {offsets = [0, 96], sizes = [8, 32], strides = [1, 1]} : vector<8x128xf32> to vector<8x32xf32>
    %123 = arith.mulf %120, %104 : vector<8x32xf32>
    %124 = arith.mulf %119, %121 : vector<8x32xf32>
    %125 = arith.addf %123, %124 : vector<8x32xf32>
    %126 = math.tanh %125 : vector<8x32xf32>
    %127 = arith.mulf %122, %126 : vector<8x32xf32>
    %c5_i32 = arith.constant 5 : i32
    %128 = arith.index_cast %c5_i32 : i32 to index
    %c0_39 = arith.constant 0 : index
    %c0_40 = arith.constant 0 : index
    %129 = vector.load %arg8[%128, %c0_39, %c0_40] : memref<8x8x128xf32, #tpu.memory_space<vmem>>, vector<1x8x128xf32>
    %130 = vector.shape_cast %129 : vector<1x8x128xf32> to vector<8x128xf32>
    %cst_41 = arith.constant dense<0.000000e+00> : vector<8x128xf32>
    %131 = tpu.matmul %127, %4, %cst_41 {dimension_numbers = #tpu.dot_dimension_numbers<[1], [0], [0], [1], [0, 0, 1, 1], [], []>} : vector<8x32xf32>, vector<32x128xf32>, vector<8x128xf32> -> vector<8x128xf32>
    %132 = arith.addf %130, %131 : vector<8x128xf32>
    %133 = math.tanh %132 : vector<8x128xf32>
    %134 = arith.negf %132 : vector<8x128xf32>
    %135 = math.exp %134 : vector<8x128xf32>
    %cst_42 = arith.constant 1.000000e+00 : f32
    %136 = vector.broadcast %cst_42 : f32 to vector<8x128xf32>
    %137 = arith.addf %136, %135 : vector<8x128xf32>
    %138 = arith.divf %136, %137 : vector<8x128xf32>
    %139 = arith.select %18, %133, %138 : vector<8x128xi1>, vector<8x128xf32>
    %140 = vector.extract_strided_slice %139 {offsets = [0, 0], sizes = [8, 32], strides = [1, 1]} : vector<8x128xf32> to vector<8x32xf32>
    %141 = vector.extract_strided_slice %139 {offsets = [0, 32], sizes = [8, 32], strides = [1, 1]} : vector<8x128xf32> to vector<8x32xf32>
    %142 = vector.extract_strided_slice %139 {offsets = [0, 64], sizes = [8, 32], strides = [1, 1]} : vector<8x128xf32> to vector<8x32xf32>
    %143 = vector.extract_strided_slice %139 {offsets = [0, 96], sizes = [8, 32], strides = [1, 1]} : vector<8x128xf32> to vector<8x32xf32>
    %144 = arith.mulf %141, %125 : vector<8x32xf32>
    %145 = arith.mulf %140, %142 : vector<8x32xf32>
    %146 = arith.addf %144, %145 : vector<8x32xf32>
    %147 = math.tanh %146 : vector<8x32xf32>
    %148 = arith.mulf %143, %147 : vector<8x32xf32>
    %c6_i32 = arith.constant 6 : i32
    %149 = arith.index_cast %c6_i32 : i32 to index
    %c0_43 = arith.constant 0 : index
    %c0_44 = arith.constant 0 : index
    %150 = vector.load %arg8[%149, %c0_43, %c0_44] : memref<8x8x128xf32, #tpu.memory_space<vmem>>, vector<1x8x128xf32>
    %151 = vector.shape_cast %150 : vector<1x8x128xf32> to vector<8x128xf32>
    %cst_45 = arith.constant dense<0.000000e+00> : vector<8x128xf32>
    %152 = tpu.matmul %148, %4, %cst_45 {dimension_numbers = #tpu.dot_dimension_numbers<[1], [0], [0], [1], [0, 0, 1, 1], [], []>} : vector<8x32xf32>, vector<32x128xf32>, vector<8x128xf32> -> vector<8x128xf32>
    %153 = arith.addf %151, %152 : vector<8x128xf32>
    %154 = math.tanh %153 : vector<8x128xf32>
    %155 = arith.negf %153 : vector<8x128xf32>
    %156 = math.exp %155 : vector<8x128xf32>
    %cst_46 = arith.constant 1.000000e+00 : f32
    %157 = vector.broadcast %cst_46 : f32 to vector<8x128xf32>
    %158 = arith.addf %157, %156 : vector<8x128xf32>
    %159 = arith.divf %157, %158 : vector<8x128xf32>
    %160 = arith.select %18, %154, %159 : vector<8x128xi1>, vector<8x128xf32>
    %161 = vector.extract_strided_slice %160 {offsets = [0, 0], sizes = [8, 32], strides = [1, 1]} : vector<8x128xf32> to vector<8x32xf32>
    %162 = vector.extract_strided_slice %160 {offsets = [0, 32], sizes = [8, 32], strides = [1, 1]} : vector<8x128xf32> to vector<8x32xf32>
    %163 = vector.extract_strided_slice %160 {offsets = [0, 64], sizes = [8, 32], strides = [1, 1]} : vector<8x128xf32> to vector<8x32xf32>
    %164 = vector.extract_strided_slice %160 {offsets = [0, 96], sizes = [8, 32], strides = [1, 1]} : vector<8x128xf32> to vector<8x32xf32>
    %165 = arith.mulf %162, %146 : vector<8x32xf32>
    %166 = arith.mulf %161, %163 : vector<8x32xf32>
    %167 = arith.addf %165, %166 : vector<8x32xf32>
    %168 = math.tanh %167 : vector<8x32xf32>
    %169 = arith.mulf %164, %168 : vector<8x32xf32>
    %c7_i32 = arith.constant 7 : i32
    %170 = arith.index_cast %c7_i32 : i32 to index
    %c0_47 = arith.constant 0 : index
    %c0_48 = arith.constant 0 : index
    %171 = vector.load %arg8[%170, %c0_47, %c0_48] : memref<8x8x128xf32, #tpu.memory_space<vmem>>, vector<1x8x128xf32>
    %172 = vector.shape_cast %171 : vector<1x8x128xf32> to vector<8x128xf32>
    %cst_49 = arith.constant dense<0.000000e+00> : vector<8x128xf32>
    %173 = tpu.matmul %169, %4, %cst_49 {dimension_numbers = #tpu.dot_dimension_numbers<[1], [0], [0], [1], [0, 0, 1, 1], [], []>} : vector<8x32xf32>, vector<32x128xf32>, vector<8x128xf32> -> vector<8x128xf32>
    %174 = arith.addf %172, %173 : vector<8x128xf32>
    %175 = math.tanh %174 : vector<8x128xf32>
    %176 = arith.negf %174 : vector<8x128xf32>
    %177 = math.exp %176 : vector<8x128xf32>
    %cst_50 = arith.constant 1.000000e+00 : f32
    %178 = vector.broadcast %cst_50 : f32 to vector<8x128xf32>
    %179 = arith.addf %178, %177 : vector<8x128xf32>
    %180 = arith.divf %178, %179 : vector<8x128xf32>
    %181 = arith.select %18, %175, %180 : vector<8x128xi1>, vector<8x128xf32>
    %182 = vector.extract_strided_slice %181 {offsets = [0, 0], sizes = [8, 32], strides = [1, 1]} : vector<8x128xf32> to vector<8x32xf32>
    %183 = vector.extract_strided_slice %181 {offsets = [0, 32], sizes = [8, 32], strides = [1, 1]} : vector<8x128xf32> to vector<8x32xf32>
    %184 = vector.extract_strided_slice %181 {offsets = [0, 64], sizes = [8, 32], strides = [1, 1]} : vector<8x128xf32> to vector<8x32xf32>
    %185 = vector.extract_strided_slice %181 {offsets = [0, 96], sizes = [8, 32], strides = [1, 1]} : vector<8x128xf32> to vector<8x32xf32>
    %186 = arith.mulf %183, %167 : vector<8x32xf32>
    %187 = arith.mulf %182, %184 : vector<8x32xf32>
    %188 = arith.addf %186, %187 : vector<8x32xf32>
    %189 = math.tanh %188 : vector<8x32xf32>
    %190 = arith.mulf %185, %189 : vector<8x32xf32>
    %c8_i32 = arith.constant 8 : i32
    %c0_51 = arith.constant 0 : index
    %c0_52 = arith.constant 0 : index
    %c0_53 = arith.constant 0 : index
    %191 = vector.load %arg6[%c0_51, %c0_52, %c0_53] : memref<1x8x32xf32, #tpu.memory_space<vmem>>, vector<1x8x32xf32>
    %192 = vector.shape_cast %191 : vector<1x8x32xf32> to vector<8x32xf32>
    %193 = vector.shape_cast %190 : vector<8x32xf32> to vector<1x8x32xf32>
    tpu.vector_store %arg6[%c0_51, %c0_52, %c0_53], %193 {strides = array<i32>} : memref<1x8x32xf32, #tpu.memory_space<vmem>>, vector<1x8x32xf32>,
    %c0_54 = arith.constant 0 : index
    %c0_55 = arith.constant 0 : index
    %c0_56 = arith.constant 0 : index
    %194 = vector.load %arg7[%c0_54, %c0_55, %c0_56] : memref<1x8x32xf32, #tpu.memory_space<vmem>>, vector<1x8x32xf32>
    %195 = vector.shape_cast %194 : vector<1x8x32xf32> to vector<8x32xf32>
    %196 = vector.shape_cast %188 : vector<8x32xf32> to vector<1x8x32xf32>
    tpu.vector_store %arg7[%c0_54, %c0_55, %c0_56], %196 {strides = array<i32>} : memref<1x8x32xf32, #tpu.memory_space<vmem>>, vector<1x8x32xf32>,
    return
  }
  func.func @transform_0(%arg0: i32, %arg1: i32) -> (i32, i32, i32) {
    %c0_i32 = arith.constant 0 : i32
    %c0_i32_0 = arith.constant 0 : i32
    return %arg1, %arg0, %c0_i32 : i32, i32, i32
  }
  func.func @transform_1(%arg0: i32, %arg1: i32) -> (i32, i32) {
    %c0_i32 = arith.constant 0 : i32
    %c0_i32_0 = arith.constant 0 : i32
    %c0_i32_1 = arith.constant 0 : i32
    return %c0_i32, %c0_i32_0 : i32, i32
  }
  func.func @transform_2(%arg0: i32, %arg1: i32) -> (i32, i32) {
    %c0_i32 = arith.constant 0 : i32
    %c0_i32_0 = arith.constant 0 : i32
    %c0_i32_1 = arith.constant 0 : i32
    return %c0_i32, %c0_i32_0 : i32, i32
  }
  func.func @transform_3(%arg0: i32, %arg1: i32) -> (i32, i32) {
    %c0_i32 = arith.constant 0 : i32
    %c0_i32_0 = arith.constant 0 : i32
    %c0_i32_1 = arith.constant 0 : i32
    return %c0_i32, %c0_i32_0 : i32, i32
  }
  func.func @transform_4(%arg0: i32, %arg1: i32) -> (i32, i32, i32) {
    %c0_i32 = arith.constant 0 : i32
    %c0_i32_0 = arith.constant 0 : i32
    %c0_i32_1 = arith.constant 0 : i32
    return %c0_i32, %arg0, %c0_i32_0 : i32, i32, i32
  }
  func.func @transform_5(%arg0: i32, %arg1: i32) -> (i32, i32, i32) {
    %c0_i32 = arith.constant 0 : i32
    %c0_i32_0 = arith.constant 0 : i32
    %c0_i32_1 = arith.constant 0 : i32
    return %c0_i32, %arg0, %c0_i32_0 : i32, i32, i32
  }
}

</mosaic_0001>

<llo_original>
// kernel: tpu_custom_call.1
$region0: #{tpu_custom_call.1}
  #allocation0 [shape = 'u32[]', space=smem, size = 0x4, offset = 0x4, fixed_abs, tag = 'smem constant byte address 0x4 - core index']
  #allocation1 [shape = 'u32[144,128]{1,0:T(1,128)}', space=vmem, size = 0x12000, scoped, tag = 'internal scratch']
  #allocation2 [shape = 'f32[8,8,128]{2,1,0:T(8,128)}', space=vmem, size = 0x8000, scoped, tag = 'scratch operand']
  %s0 = inlined_call_operand.hbm [shape: f32[8,8,16], index: 0, kind: input, shape index: {}]
  %s1 = inlined_call_operand.hbm [shape: f32[16,128], index: 1, kind: input, shape index: {}]
  %s2 = inlined_call_operand.hbm [shape: f32[32,128], index: 2, kind: input, shape index: {}]
  %s3 = inlined_call_operand.vmem [shape: f32[1,128], index: 3, kind: input, shape index: {}]
  %s4 = inlined_call_operand.hbm [shape: f32[1,8,32], index: 4, kind: output, shape index: {0}]
  %s5 = inlined_call_operand.hbm [shape: f32[1,8,32], index: 5, kind: output, shape index: {1}]
  %6 = xla_tuple %s4, %s5
  %s7 = sld [smem:[#allocation0]]
  $region50: #{tpu_custom_call.1} parent=0
    _
  %s9 = ssub.s32 1, %s7
  %s10 = scalar_select 0, %s9, %s7
  $region1: #{tpu_custom_call.1} parent=0
    #allocation3 [shape = 'u8[32768]{0}', space=vmem, size = 0x8000, scoped, tag = 'input window, operand 0, single buffered']
    #allocation4 [shape = 's32[1]{0}', space=sflag, size = 0x4, scoped, tag = 'scoped memory for tpu_custom_call.1']
    #allocation5 [shape = 's32[1]{0}', space=sflag, size = 0x4, scoped, tag = 'scoped memory for tpu_custom_call.1']
    #allocation6 [shape = 'u8[8192]{0}', space=vmem, size = 0x2000, scoped, tag = 'input window, operand 1, single buffered']
    #allocation7 [shape = 's32[1]{0}', space=sflag, size = 0x4, scoped, tag = 'scoped memory for tpu_custom_call.1']
    #allocation8 [shape = 'u8[16384]{0}', space=vmem, size = 0x4000, scoped, tag = 'input window, operand 2, single buffered']
    #allocation9 [shape = 'u8[4096]{0}', space=vmem, size = 0x1000, scoped, tag = 'output window, operand 0, single buffered']
    #allocation10 [shape = 'u8[4096]{0}', space=vmem, size = 0x1000, scoped, tag = 'output window, operand 1, single buffered']
    #allocation11 [shape = 's32[1]{0}', space=sflag, size = 0x4, scoped, tag = 'scoped memory for tpu_custom_call.1']
    %11 = vsyncpa [#allocation4], 0
    %12 = vsyncpa [#allocation7], 0
    %13 = vsyncpa [#allocation5], 0
    %14 = vsyncpa [#allocation11], 0
    // Predicated region
    $region2: #{tpu_custom_call.1} parent=1 // pred_check
      _
    $region3: #{tpu_custom_call.1} parent=1 // pred_check_branch
      %16 = sbr.rel (0) target = $region5
    $region4: #{tpu_custom_call.1} parent=1 // pred_region
      %s18 = ssub.s32 1024, 1024
      %19 = vsyncadd [#allocation4], %s18
      %s20 = sshll.u32 [#allocation3], 4
      %s21 = int_to_ptr.vmem [resolvable:$true] %s20
      %26 = dma.hbm_to_vmem [thread:$0]  %s0, 1024, %s21, [#allocation4], 128, 128, 8
    $region5: #{tpu_custom_call.1} parent=1 // pred_fallthru
      _
    // Predicated region
    $region6: #{tpu_custom_call.1} parent=1 // pred_check
      _
    $region7: #{tpu_custom_call.1} parent=1 // pred_check_branch
      %28 = sbr.rel (0) target = $region9
    $region8: #{tpu_custom_call.1} parent=1 // pred_region
      %s30 = ssub.s32 256, 256
      %31 = vsyncadd [#allocation7], %s30
      %s32 = sshll.u32 [#allocation6], 4
      %s33 = int_to_ptr.vmem [resolvable:$true] %s32
      %38 = dma.hbm_to_vmem [thread:$0]  %s1, 256, %s33, [#allocation7], 128, 128, 8
    $region9: #{tpu_custom_call.1} parent=1 // pred_fallthru
      _
    // Predicated region
    $region10: #{tpu_custom_call.1} parent=1 // pred_check
      _
    $region11: #{tpu_custom_call.1} parent=1 // pred_check_branch
      %40 = sbr.rel (0) target = $region13
    $region12: #{tpu_custom_call.1} parent=1 // pred_region
      %s42 = ssub.s32 512, 512
      %43 = vsyncadd [#allocation7], %s42
      %s44 = sshll.u32 [#allocation8], 4
      %s45 = int_to_ptr.vmem [resolvable:$true] %s44
      %50 = dma.hbm_to_vmem [thread:$0]  %s2, 512, %s45, [#allocation7], 128, 128, 8
    $region13: #{tpu_custom_call.1} parent=1 // pred_fallthru
      _
    // Predicated region
    $region14: #{tpu_custom_call.1} parent=1 // pred_check
      _
    $region15: #{tpu_custom_call.1} parent=1 // pred_check_branch
      %52 = sbr.rel (0) target = $region17
    $region16: #{tpu_custom_call.1} parent=1 // pred_region
      _
    $region17: #{tpu_custom_call.1} parent=1 // pred_fallthru
      _
    // Predicated region
    $region18: #{tpu_custom_call.1} parent=1 // pred_check
      _
    $region19: #{tpu_custom_call.1} parent=1 // pred_check_branch
      %54 = sbr.rel (0) target = $region21
    $region20: #{tpu_custom_call.1} parent=1 // pred_region
      %55 = dma.done [#allocation4], 1024
    $region21: #{tpu_custom_call.1} parent=1 // pred_fallthru
      _
    // Predicated region
    $region22: #{tpu_custom_call.1} parent=1 // pred_check
      _
    $region23: #{tpu_custom_call.1} parent=1 // pred_check_branch
      %57 = sbr.rel (0) target = $region25
    $region24: #{tpu_custom_call.1} parent=1 // pred_region
      %58 = dma.done [#allocation7], 256
    $region25: #{tpu_custom_call.1} parent=1 // pred_fallthru
      _
    // Predicated region
    $region26: #{tpu_custom_call.1} parent=1 // pred_check
      _
    $region27: #{tpu_custom_call.1} parent=1 // pred_check_branch
      %60 = sbr.rel (0) target = $region29
    $region28: #{tpu_custom_call.1} parent=1 // pred_region
      %61 = dma.done [#allocation7], 512
    $region29: #{tpu_custom_call.1} parent=1 // pred_fallthru
      _
    %p62 = scmp.eq.s32.totalorder 0, 0
    // Predicated region
    $region30: #{tpu_custom_call.1} parent=1 // pred_check
      %p63 = pneg %p62
    $region31: #{tpu_custom_call.1} parent=1 // pred_check_branch
      %65 = sbr.rel (%p63) target = $region33
    $region32: #{tpu_custom_call.1} parent=1 // pred_region
      %vm66 = vcmask 261120
      %67 = vst.msk [vmem:[#allocation9] sm:$0xff] %vm66, 0.0
      %68 = vst.msk [vmem:[#allocation10] sm:$0xff] %vm66, 0.0
    $region33: #{tpu_custom_call.1} parent=1 // pred_fallthru
      _
    %v69 = vld [vmem:[#allocation6] sm:$0xff]
    %v70 = vld [vmem:[#allocation6 + $0x8] sm:$0xff]
    %v71 = vld [vmem:[#allocation8] sm:$0xff]
    %v72 = vld [vmem:[#allocation8 + $0x8] sm:$0xff]
    %v73 = vld [vmem:[#allocation8 + $0x10] sm:$0xff]
    %v74 = vld [vmem:[#allocation8 + $0x18] sm:$0xff]
    %v75 = vld [vmem:[%s3] sm:$0x1]
    %v76 = vld [vmem:[#allocation3] sm:$0xff]
    %v77 = vld [vmem:[#allocation3 + $0x8] sm:$0xff]
    %v78 = vld [vmem:[#allocation3 + $0x10] sm:$0xff]
    %v79 = vld [vmem:[#allocation3 + $0x18] sm:$0xff]
    %v80 = vld [vmem:[#allocation3 + $0x20] sm:$0xff]
    %v81 = vld [vmem:[#allocation3 + $0x28] sm:$0xff]
    %v82 = vld [vmem:[#allocation3 + $0x30] sm:$0xff]
    %v83 = vld [vmem:[#allocation3 + $0x38] sm:$0xff]
    %v85 = vlaneseq
    %v86 = vshrl.u32 %v85, 7
    %v87 = vsub.s32 0, %v86
    %v88 = vrot.slane %v75, %v87
    %vm90 = vcmask 130048
    %v92 = vsel %vm90, %v76, 0
    %v95 = vsel %vm90, %v77, 0
    %v98 = vsel %vm90, %v78, 0
    %v101 = vsel %vm90, %v79, 0
    %v104 = vsel %vm90, %v80, 0
    %v107 = vsel %vm90, %v81, 0
    %v110 = vsel %vm90, %v82, 0
    %v113 = vsel %vm90, %v83, 0
    %115 = vmatprep.subr.mxu0 0.0
    %116 = vmatpush1.msra.mxu0 %v69
    %117 = vmatprep.subr.mxu0 0.0
    %118 = vmatpush1.msra.mxu0 %v70
    %119 = vmatprep.subr.mxu0 0.0
    %120 = vmatpush1.msra.mxu0 0.0
    %121 = vmatprep.subr.mxu0 0.0
    %122 = vmatpush1.msra.mxu0 0.0
    %123 = vmatprep.subr.mxu0 0.0
    %124 = vmatpush1.msra.mxu0 0.0
    %125 = vmatprep.subr.mxu0 0.0
    %126 = vmatpush1.msra.mxu0 0.0
    %127 = vmatprep.subr.mxu0 0.0
    %128 = vmatpush1.msra.mxu0 0.0
    %129 = vmatprep.subr.mxu0 0.0
    %130 = vmatpush1.msra.mxu0 0.0
    %131 = vmatprep.subr.mxu0 0.0
    %132 = vmatpush1.msra.mxu0 0.0
    %133 = vmatprep.subr.mxu0 0.0
    %134 = vmatpush1.msra.mxu0 0.0
    %135 = vmatprep.subr.mxu0 0.0
    %136 = vmatpush1.msra.mxu0 0.0
    %137 = vmatprep.subr.mxu0 0.0
    %138 = vmatpush1.msra.mxu0 0.0
    %139 = vmatprep.subr.mxu0 0.0
    %140 = vmatpush1.msra.mxu0 0.0
    %141 = vmatprep.subr.mxu0 0.0
    %142 = vmatpush1.msra.mxu0 0.0
    %143 = vmatprep.subr.mxu0 0.0
    %144 = vmatpush1.msra.mxu0 0.0
    %145 = vmatprep.subr.mxu0 0.0
    %146 = vmatpush1.msra.mxu0 0.0
    %147 = vmatprep.subr.mxu0 0.0
    %148 = vmatpush1.msra.mxu0 0.0
    %149 = vmatprep.subr.mxu0 0.0
    %150 = vmatpush1.msra.mxu0 0.0
    %151 = vmatprep.subr.mxu0 0.0
    %152 = vmatpush1.msra.mxu0 0.0
    %153 = vmatprep.subr.mxu0 0.0
    %154 = vmatpush1.msra.mxu0 0.0
    %155 = vmatprep.subr.mxu0 0.0
    %156 = vmatpush1.msra.mxu0 0.0
    %157 = vmatprep.subr.mxu0 0.0
    %158 = vmatpush1.msra.mxu0 0.0
    %159 = vmatprep.subr.mxu0 0.0
    %160 = vmatpush1.msra.mxu0 0.0
    %161 = vmatprep.subr.mxu0 0.0
    %162 = vmatpush1.msra.mxu0 0.0
    %163 = vmatprep.subr.mxu0 0.0
    %164 = vmatpush1.msra.mxu0 0.0
    %165 = vmatprep.subr.mxu0 0.0
    %166 = vmatpush1.msra.mxu0 0.0
    %167 = vmatprep.subr.mxu0 0.0
    %168 = vmatpush1.msra.mxu0 0.0
    %169 = vmatprep.subr.mxu0 0.0
    %170 = vmatpush1.msra.mxu0 0.0
    %171 = vmatprep.subr.mxu0 0.0
    %172 = vmatpush1.msra.mxu0 0.0
    %173 = vmatprep.subr.mxu0 0.0
    %174 = vmatpush1.msra.mxu0 0.0
    %175 = vmatprep.subr.mxu0 0.0
    %176 = vmatpush1.msra.mxu0 0.0
    %177 = vmatprep.subr.mxu0 0.0
    %178 = vmatpush1.msra.mxu0 0.0
    %179 = vmatprep.mubr.f32.mxu0 0.0
    %180 = vmatmul.mubr.f32.gmra.mrb[0].mxu0 %v92
    %v181 = vpop.f32.mrb[0].mxu0
    %v182 = vadd.f32 %v88, %v181
    %v183 = vpop.f32.mrb[0].mxu0
    %184 = vmatprep.mubr.f32.mxu0 0.0
    %185 = vmatmul.mubr.f32.gmra.mrb[0].mxu0 %v95
    %v186 = vpop.f32.mrb[0].mxu0
    %v187 = vadd.f32 %v88, %v186
    %v188 = vpop.f32.mrb[0].mxu0
    %189 = vmatprep.mubr.f32.mxu0 0.0
    %190 = vmatmul.mubr.f32.gmra.mrb[0].mxu0 %v98
    %v191 = vpop.f32.mrb[0].mxu0
    %v192 = vadd.f32 %v88, %v191
    %v193 = vpop.f32.mrb[0].mxu0
    %194 = vmatprep.mubr.f32.mxu0 0.0
    %195 = vmatmul.mubr.f32.gmra.mrb[0].mxu0 %v101
    %v196 = vpop.f32.mrb[0].mxu0
    %v197 = vadd.f32 %v88, %v196
    %v198 = vpop.f32.mrb[0].mxu0
    %199 = vmatprep.mubr.f32.mxu0 0.0
    %200 = vmatmul.mubr.f32.gmra.mrb[0].mxu0 %v104
    %v201 = vpop.f32.mrb[0].mxu0
    %v202 = vadd.f32 %v88, %v201
    %v203 = vpop.f32.mrb[0].mxu0
    %204 = vmatprep.mubr.f32.mxu0 0.0
    %205 = vmatmul.mubr.f32.gmra.mrb[0].mxu0 %v107
    %v206 = vpop.f32.mrb[0].mxu0
    %v207 = vadd.f32 %v88, %v206
    %v208 = vpop.f32.mrb[0].mxu0
    %209 = vmatprep.mubr.f32.mxu0 0.0
    %210 = vmatmul.mubr.f32.gmra.mrb[0].mxu0 %v110
    %v211 = vpop.f32.mrb[0].mxu0
    %v212 = vadd.f32 %v88, %v211
    %v213 = vpop.f32.mrb[0].mxu0
    %214 = vmatprep.mubr.f32.mxu0 0.0
    %215 = vmatmul.mubr.f32.gmra.mrb[0].mxu0 %v113
    %v216 = vpop.f32.mrb[0].mxu0
    %v217 = vadd.f32 %v88, %v216
    %v218 = vpop.f32.mrb[0].mxu0
    %219 = vdwg.mxu0
    %220 = vst [vmem:[#allocation2] sm:$0xff] %v182
    %221 = vst [vmem:[#allocation2 + $0x8] sm:$0xff] %v187
    %222 = vst [vmem:[#allocation2 + $0x10] sm:$0xff] %v192
    %223 = vst [vmem:[#allocation2 + $0x18] sm:$0xff] %v197
    %224 = vst [vmem:[#allocation2 + $0x20] sm:$0xff] %v202
    %225 = vst [vmem:[#allocation2 + $0x28] sm:$0xff] %v207
    %226 = vst [vmem:[#allocation2 + $0x30] sm:$0xff] %v212
    %227 = vst [vmem:[#allocation2 + $0x38] sm:$0xff] %v217
    %v228 = vlaneseq
    %v229 = vand.u32 %v228, 127
    %vm230 = vcmp.ge.s32.totalorder %v229, 64
    %vm231 = vcmp.lt.s32.totalorder %v229, 96
    %vm232 = vmand %vm230, %vm231
    %v233 = vld [vmem:[#allocation9] sm:$0xff]
    %v234 = vld [vmem:[#allocation10] sm:$0xff]
    %v235 = vld [vmem:[#allocation2] sm:$0xff]
    %vm236 = vcmask 261120
    %v238 = vsel %vm236, %v233, 0
    %240 = vmatprep.subr.mxu0 0.0
    %241 = vmatpush1.msra.mxu0 %v71
    %242 = vmatprep.subr.mxu0 0.0
    %243 = vmatpush1.msra.mxu0 %v72
    %244 = vmatprep.subr.mxu0 0.0
    %245 = vmatpush1.msra.mxu0 %v73
    %246 = vmatprep.subr.mxu0 0.0
    %247 = vmatpush1.msra.mxu0 %v74
    %248 = vmatprep.subr.mxu0 0.0
    %249 = vmatpush1.msra.mxu0 0.0
    %250 = vmatprep.subr.mxu0 0.0
    %251 = vmatpush1.msra.mxu0 0.0
    %252 = vmatprep.subr.mxu0 0.0
    %253 = vmatpush1.msra.mxu0 0.0
    %254 = vmatprep.subr.mxu0 0.0
    %255 = vmatpush1.msra.mxu0 0.0
    %256 = vmatprep.subr.mxu0 0.0
    %257 = vmatpush1.msra.mxu0 0.0
    %258 = vmatprep.subr.mxu0 0.0
    %259 = vmatpush1.msra.mxu0 0.0
    %260 = vmatprep.subr.mxu0 0.0
    %261 = vmatpush1.msra.mxu0 0.0
    %262 = vmatprep.subr.mxu0 0.0
    %263 = vmatpush1.msra.mxu0 0.0
    %264 = vmatprep.subr.mxu0 0.0
    %265 = vmatpush1.msra.mxu0 0.0
    %266 = vmatprep.subr.mxu0 0.0
    %267 = vmatpush1.msra.mxu0 0.0
    %268 = vmatprep.subr.mxu0 0.0
    %269 = vmatpush1.msra.mxu0 0.0
    %270 = vmatprep.subr.mxu0 0.0
    %271 = vmatpush1.msra.mxu0 0.0
    %272 = vmatprep.subr.mxu0 0.0
    %273 = vmatpush1.msra.mxu0 0.0
    %274 = vmatprep.subr.mxu0 0.0
    %275 = vmatpush1.msra.mxu0 0.0
    %276 = vmatprep.subr.mxu0 0.0
    %277 = vmatpush1.msra.mxu0 0.0
    %278 = vmatprep.subr.mxu0 0.0
    %279 = vmatpush1.msra.mxu0 0.0
    %280 = vmatprep.subr.mxu0 0.0
    %281 = vmatpush1.msra.mxu0 0.0
    %282 = vmatprep.subr.mxu0 0.0
    %283 = vmatpush1.msra.mxu0 0.0
    %284 = vmatprep.subr.mxu0 0.0
    %285 = vmatpush1.msra.mxu0 0.0
    %286 = vmatprep.subr.mxu0 0.0
    %287 = vmatpush1.msra.mxu0 0.0
    %288 = vmatprep.subr.mxu0 0.0
    %289 = vmatpush1.msra.mxu0 0.0
    %290 = vmatprep.subr.mxu0 0.0
    %291 = vmatpush1.msra.mxu0 0.0
    %292 = vmatprep.subr.mxu0 0.0
    %293 = vmatpush1.msra.mxu0 0.0
    %294 = vmatprep.subr.mxu0 0.0
    %295 = vmatpush1.msra.mxu0 0.0
    %296 = vmatprep.subr.mxu0 0.0
    %297 = vmatpush1.msra.mxu0 0.0
    %298 = vmatprep.subr.mxu0 0.0
    %299 = vmatpush1.msra.mxu0 0.0
    %300 = vmatprep.subr.mxu0 0.0
    %301 = vmatpush1.msra.mxu0 0.0
    %302 = vmatprep.subr.mxu0 0.0
    %303 = vmatpush1.msra.mxu0 0.0
    %304 = vmatprep.mubr.f32.mxu0 0.0
    %305 = vmatmul.mubr.f32.gmra.mrb[0].mxu0 %v238
    %v306 = vpop.f32.mrb[0].mxu0
    %v307 = vadd.f32 0.0, %v306
    %v308 = vpop.f32.mrb[0].mxu0
    %309 = vdwg.mxu0
    %v310 = vadd.f32 %v235, %v307
    %v311 = vtanh.pop %v310
    %v312 = vxor.u32 %v310, 2147483648
    %v313 = vmul.f32 %v312, 1.442695
    %v314 = vpow.pop %v313
    %v315 = vadd.f32 %v314, 1.0
    %v316 = vrcp.pop %v315
    %v317 = vmul.f32 1.0, %v316
    %v318 = vsel %vm232, %v311, %v317
    %320 = vrot.lane.b32.xlu0 %v234, 32
    %v321 = vpop.permute.xlu0 %320
    %v323 = vmul.f32 %v318, %v321
    %325 = vrot.lane.b32.xlu0 %v318, 64
    %v326 = vpop.permute.xlu0 %325
    %v328 = vmul.f32 %v318, %v326
    %330 = vrot.lane.b32.xlu0 %v328, 32
    %v331 = vpop.permute.xlu0 %330
    %v333 = vadd.f32 %v323, %v331
    %v334 = vtanh.pop %v333
    %336 = vrot.lane.b32.xlu0 %v334, 64
    %v337 = vpop.permute.xlu0 %336
    %v339 = vmul.f32 %v318, %v337
    %s340 = scalar_lea.vmem [#allocation2], 8
    %v341 = vld [vmem:[%s340] sm:$0xff]
    %343 = vrot.lane.b32.xlu0 %v339, 32
    %v344 = vpop.permute.xlu0 %343
    %v345 = vsel %vm236, %v344, 0
    %347 = vmatprep.subr.mxu0 0.0
    %348 = vmatpush1.msra.mxu0 %v71
    %349 = vmatprep.subr.mxu0 0.0
    %350 = vmatpush1.msra.mxu0 %v72
    %351 = vmatprep.subr.mxu0 0.0
    %352 = vmatpush1.msra.mxu0 %v73
    %353 = vmatprep.subr.mxu0 0.0
    %354 = vmatpush1.msra.mxu0 %v74
    %355 = vmatprep.subr.mxu0 0.0
    %356 = vmatpush1.msra.mxu0 0.0
    %357 = vmatprep.subr.mxu0 0.0
    %358 = vmatpush1.msra.mxu0 0.0
    %359 = vmatprep.subr.mxu0 0.0
    %360 = vmatpush1.msra.mxu0 0.0
    %361 = vmatprep.subr.mxu0 0.0
    %362 = vmatpush1.msra.mxu0 0.0
    %363 = vmatprep.subr.mxu0 0.0
    %364 = vmatpush1.msra.mxu0 0.0
    %365 = vmatprep.subr.mxu0 0.0
    %366 = vmatpush1.msra.mxu0 0.0
    %367 = vmatprep.subr.mxu0 0.0
    %368 = vmatpush1.msra.mxu0 0.0
    %369 = vmatprep.subr.mxu0 0.0
    %370 = vmatpush1.msra.mxu0 0.0
    %371 = vmatprep.subr.mxu0 0.0
    %372 = vmatpush1.msra.mxu0 0.0
    %373 = vmatprep.subr.mxu0 0.0
    %374 = vmatpush1.msra.mxu0 0.0
    %375 = vmatprep.subr.mxu0 0.0
    %376 = vmatpush1.msra.mxu0 0.0
    %377 = vmatprep.subr.mxu0 0.0
    %378 = vmatpush1.msra.mxu0 0.0
    %379 = vmatprep.subr.mxu0 0.0
    %380 = vmatpush1.msra.mxu0 0.0
    %381 = vmatprep.subr.mxu0 0.0
    %382 = vmatpush1.msra.mxu0 0.0
    %383 = vmatprep.subr.mxu0 0.0
    %384 = vmatpush1.msra.mxu0 0.0
    %385 = vmatprep.subr.mxu0 0.0
    %386 = vmatpush1.msra.mxu0 0.0
    %387 = vmatprep.subr.mxu0 0.0
    %388 = vmatpush1.msra.mxu0 0.0
    %389 = vmatprep.subr.mxu0 0.0
    %390 = vmatpush1.msra.mxu0 0.0
    %391 = vmatprep.subr.mxu0 0.0
    %392 = vmatpush1.msra.mxu0 0.0
    %393 = vmatprep.subr.mxu0 0.0
    %394 = vmatpush1.msra.mxu0 0.0
    %395 = vmatprep.subr.mxu0 0.0
    %396 = vmatpush1.msra.mxu0 0.0
    %397 = vmatprep.subr.mxu0 0.0
    %398 = vmatpush1.msra.mxu0 0.0
    %399 = vmatprep.subr.mxu0 0.0
    %400 = vmatpush1.msra.mxu0 0.0
    %401 = vmatprep.subr.mxu0 0.0
    %402 = vmatpush1.msra.mxu0 0.0
    %403 = vmatprep.subr.mxu0 0.0
    %404 = vmatpush1.msra.mxu0 0.0
    %405 = vmatprep.subr.mxu0 0.0
    %406 = vmatpush1.msra.mxu0 0.0
    %407 = vmatprep.subr.mxu0 0.0
    %408 = vmatpush1.msra.mxu0 0.0
    %409 = vmatprep.subr.mxu0 0.0
    %410 = vmatpush1.msra.mxu0 0.0
    %411 = vmatprep.mubr.f32.mxu0 0.0
    %412 = vmatmul.mubr.f32.gmra.mrb[0].mxu0 %v345
    %v413 = vpop.f32.mrb[0].mxu0
    %v414 = vadd.f32 0.0, %v413
    %v415 = vpop.f32.mrb[0].mxu0
    %416 = vdwg.mxu0
    %v417 = vadd.f32 %v341, %v414
    %v418 = vtanh.pop %v417
    %v419 = vxor.u32 %v417, 2147483648
    %v420 = vmul.f32 %v419, 1.442695
    %v421 = vpow.pop %v420
    %v422 = vadd.f32 %v421, 1.0
    %v423 = vrcp.pop %v422
    %v424 = vmul.f32 1.0, %v423
    %v425 = vsel %vm232, %v418, %v424
    %v426 = vmul.f32 %v425, %v333
    %428 = vrot.lane.b32.xlu0 %v425, 64
    %v429 = vpop.permute.xlu0 %428
    %v431 = vmul.f32 %v425, %v429
    %433 = vrot.lane.b32.xlu0 %v431, 32
    %v434 = vpop.permute.xlu0 %433
    %v436 = vadd.f32 %v426, %v434
    %v437 = vtanh.pop %v436
    %439 = vrot.lane.b32.xlu0 %v437, 64
    %v440 = vpop.permute.xlu0 %439
    %v442 = vmul.f32 %v425, %v440
    %s443 = scalar_lea.vmem [#allocation2], 16
    %v444 = vld [vmem:[%s443] sm:$0xff]
    %446 = vrot.lane.b32.xlu0 %v442, 32
    %v447 = vpop.permute.xlu0 %446
    %v448 = vsel %vm236, %v447, 0
    %450 = vmatprep.subr.mxu0 0.0
    %451 = vmatpush1.msra.mxu0 %v71
    %452 = vmatprep.subr.mxu0 0.0
    %453 = vmatpush1.msra.mxu0 %v72
    %454 = vmatprep.subr.mxu0 0.0
    %455 = vmatpush1.msra.mxu0 %v73
    %456 = vmatprep.subr.mxu0 0.0
    %457 = vmatpush1.msra.mxu0 %v74
    %458 = vmatprep.subr.mxu0 0.0
    %459 = vmatpush1.msra.mxu0 0.0
    %460 = vmatprep.subr.mxu0 0.0
    %461 = vmatpush1.msra.mxu0 0.0
    %462 = vmatprep.subr.mxu0 0.0
    %463 = vmatpush1.msra.mxu0 0.0
    %464 = vmatprep.subr.mxu0 0.0
    %465 = vmatpush1.msra.mxu0 0.0
    %466 = vmatprep.subr.mxu0 0.0
    %467 = vmatpush1.msra.mxu0 0.0
    %468 = vmatprep.subr.mxu0 0.0
    %469 = vmatpush1.msra.mxu0 0.0
    %470 = vmatprep.subr.mxu0 0.0
    %471 = vmatpush1.msra.mxu0 0.0
    %472 = vmatprep.subr.mxu0 0.0
    %473 = vmatpush1.msra.mxu0 0.0
    %474 = vmatprep.subr.mxu0 0.0
    %475 = vmatpush1.msra.mxu0 0.0
    %476 = vmatprep.subr.mxu0 0.0
    %477 = vmatpush1.msra.mxu0 0.0
    %478 = vmatprep.subr.mxu0 0.0
    %479 = vmatpush1.msra.mxu0 0.0
    %480 = vmatprep.subr.mxu0 0.0
    %481 = vmatpush1.msra.mxu0 0.0
    %482 = vmatprep.subr.mxu0 0.0
    %483 = vmatpush1.msra.mxu0 0.0
    %484 = vmatprep.subr.mxu0 0.0
    %485 = vmatpush1.msra.mxu0 0.0
    %486 = vmatprep.subr.mxu0 0.0
    %487 = vmatpush1.msra.mxu0 0.0
    %488 = vmatprep.subr.mxu0 0.0
    %489 = vmatpush1.msra.mxu0 0.0
    %490 = vmatprep.subr.mxu0 0.0
    %491 = vmatpush1.msra.mxu0 0.0
    %492 = vmatprep.subr.mxu0 0.0
    %493 = vmatpush1.msra.mxu0 0.0
    %494 = vmatprep.subr.mxu0 0.0
    %495 = vmatpush1.msra.mxu0 0.0
    %496 = vmatprep.subr.mxu0 0.0
    %497 = vmatpush1.msra.mxu0 0.0
    %498 = vmatprep.subr.mxu0 0.0
    %499 = vmatpush1.msra.mxu0 0.0
    %500 = vmatprep.subr.mxu0 0.0
    %501 = vmatpush1.msra.mxu0 0.0
    %502 = vmatprep.subr.mxu0 0.0
    %503 = vmatpush1.msra.mxu0 0.0
    %504 = vmatprep.subr.mxu0 0.0
    %505 = vmatpush1.msra.mxu0 0.0
    %506 = vmatprep.subr.mxu0 0.0
    %507 = vmatpush1.msra.mxu0 0.0
    %508 = vmatprep.subr.mxu0 0.0
    %509 = vmatpush1.msra.mxu0 0.0
    %510 = vmatprep.subr.mxu0 0.0
    %511 = vmatpush1.msra.mxu0 0.0
    %512 = vmatprep.subr.mxu0 0.0
    %513 = vmatpush1.msra.mxu0 0.0
    %514 = vmatprep.mubr.f32.mxu0 0.0
    %515 = vmatmul.mubr.f32.gmra.mrb[0].mxu0 %v448
    %v516 = vpop.f32.mrb[0].mxu0
    %v517 = vadd.f32 0.0, %v516
    %v518 = vpop.f32.mrb[0].mxu0
    %519 = vdwg.mxu0
    %v520 = vadd.f32 %v444, %v517
    %v521 = vtanh.pop %v520
    %v522 = vxor.u32 %v520, 2147483648
    %v523 = vmul.f32 %v522, 1.442695
    %v524 = vpow.pop %v523
    %v525 = vadd.f32 %v524, 1.0
    %v526 = vrcp.pop %v525
    %v527 = vmul.f32 1.0, %v526
    %v528 = vsel %vm232, %v521, %v527
    %v529 = vmul.f32 %v528, %v436
    %531 = vrot.lane.b32.xlu0 %v528, 64
    %v532 = vpop.permute.xlu0 %531
    %v534 = vmul.f32 %v528, %v532
    %536 = vrot.lane.b32.xlu0 %v534, 32
    %v537 = vpop.permute.xlu0 %536
    %v539 = vadd.f32 %v529, %v537
    %v540 = vtanh.pop %v539
    %542 = vrot.lane.b32.xlu0 %v540, 64
    %v543 = vpop.permute.xlu0 %542
    %v545 = vmul.f32 %v528, %v543
    %s546 = scalar_lea.vmem [#allocation2], 24
    %v547 = vld [vmem:[%s546] sm:$0xff]
    %549 = vrot.lane.b32.xlu0 %v545, 32
    %v550 = vpop.permute.xlu0 %549
    %v551 = vsel %vm236, %v550, 0
    %553 = vmatprep.subr.mxu0 0.0
    %554 = vmatpush1.msra.mxu0 %v71
    %555 = vmatprep.subr.mxu0 0.0
    %556 = vmatpush1.msra.mxu0 %v72
    %557 = vmatprep.subr.mxu0 0.0
    %558 = vmatpush1.msra.mxu0 %v73
    %559 = vmatprep.subr.mxu0 0.0
    %560 = vmatpush1.msra.mxu0 %v74
    %561 = vmatprep.subr.mxu0 0.0
    %562 = vmatpush1.msra.mxu0 0.0
    %563 = vmatprep.subr.mxu0 0.0
    %564 = vmatpush1.msra.mxu0 0.0
    %565 = vmatprep.subr.mxu0 0.0
    %566 = vmatpush1.msra.mxu0 0.0
    %567 = vmatprep.subr.mxu0 0.0
    %568 = vmatpush1.msra.mxu0 0.0
    %569 = vmatprep.subr.mxu0 0.0
    %570 = vmatpush1.msra.mxu0 0.0
    %571 = vmatprep.subr.mxu0 0.0
    %572 = vmatpush1.msra.mxu0 0.0
    %573 = vmatprep.subr.mxu0 0.0
    %574 = vmatpush1.msra.mxu0 0.0
    %575 = vmatprep.subr.mxu0 0.0
    %576 = vmatpush1.msra.mxu0 0.0
    %577 = vmatprep.subr.mxu0 0.0
    %578 = vmatpush1.msra.mxu0 0.0
    %579 = vmatprep.subr.mxu0 0.0
    %580 = vmatpush1.msra.mxu0 0.0
    %581 = vmatprep.subr.mxu0 0.0
    %582 = vmatpush1.msra.mxu0 0.0
    %583 = vmatprep.subr.mxu0 0.0
    %584 = vmatpush1.msra.mxu0 0.0
    %585 = vmatprep.subr.mxu0 0.0
    %586 = vmatpush1.msra.mxu0 0.0
    %587 = vmatprep.subr.mxu0 0.0
    %588 = vmatpush1.msra.mxu0 0.0
    %589 = vmatprep.subr.mxu0 0.0
    %590 = vmatpush1.msra.mxu0 0.0
    %591 = vmatprep.subr.mxu0 0.0
    %592 = vmatpush1.msra.mxu0 0.0
    %593 = vmatprep.subr.mxu0 0.0
    %594 = vmatpush1.msra.mxu0 0.0
    %595 = vmatprep.subr.mxu0 0.0
    %596 = vmatpush1.msra.mxu0 0.0
    %597 = vmatprep.subr.mxu0 0.0
    %598 = vmatpush1.msra.mxu0 0.0
    %599 = vmatprep.subr.mxu0 0.0
    %600 = vmatpush1.msra.mxu0 0.0
    %601 = vmatprep.subr.mxu0 0.0
    %602 = vmatpush1.msra.mxu0 0.0
    %603 = vmatprep.subr.mxu0 0.0
    %604 = vmatpush1.msra.mxu0 0.0
    %605 = vmatprep.subr.mxu0 0.0
    %606 = vmatpush1.msra.mxu0 0.0
    %607 = vmatprep.subr.mxu0 0.0
    %608 = vmatpush1.msra.mxu0 0.0
    %609 = vmatprep.subr.mxu0 0.0
    %610 = vmatpush1.msra.mxu0 0.0
    %611 = vmatprep.subr.mxu0 0.0
    %612 = vmatpush1.msra.mxu0 0.0
    %613 = vmatprep.subr.mxu0 0.0
    %614 = vmatpush1.msra.mxu0 0.0
    %615 = vmatprep.subr.mxu0 0.0
    %616 = vmatpush1.msra.mxu0 0.0
    %617 = vmatprep.mubr.f32.mxu0 0.0
    %618 = vmatmul.mubr.f32.gmra.mrb[0].mxu0 %v551
    %v619 = vpop.f32.mrb[0].mxu0
    %v620 = vadd.f32 0.0, %v619
    %v621 = vpop.f32.mrb[0].mxu0
    %622 = vdwg.mxu0
    %v623 = vadd.f32 %v547, %v620
    %v624 = vtanh.pop %v623
    %v625 = vxor.u32 %v623, 2147483648
    %v626 = vmul.f32 %v625, 1.442695
    %v627 = vpow.pop %v626
    %v628 = vadd.f32 %v627, 1.0
    %v629 = vrcp.pop %v628
    %v630 = vmul.f32 1.0, %v629
    %v631 = vsel %vm232, %v624, %v630
    %v632 = vmul.f32 %v631, %v539
    %634 = vrot.lane.b32.xlu0 %v631, 64
    %v635 = vpop.permute.xlu0 %634
    %v637 = vmul.f32 %v631, %v635
    %639 = vrot.lane.b32.xlu0 %v637, 32
    %v640 = vpop.permute.xlu0 %639
    %v642 = vadd.f32 %v632, %v640
    %v643 = vtanh.pop %v642
    %645 = vrot.lane.b32.xlu0 %v643, 64
    %v646 = vpop.permute.xlu0 %645
    %v648 = vmul.f32 %v631, %v646
    %s649 = scalar_lea.vmem [#allocation2], 32
    %v650 = vld [vmem:[%s649] sm:$0xff]
    %652 = vrot.lane.b32.xlu0 %v648, 32
    %v653 = vpop.permute.xlu0 %652
    %v654 = vsel %vm236, %v653, 0
    %656 = vmatprep.subr.mxu0 0.0
    %657 = vmatpush1.msra.mxu0 %v71
    %658 = vmatprep.subr.mxu0 0.0
    %659 = vmatpush1.msra.mxu0 %v72
    %660 = vmatprep.subr.mxu0 0.0
    %661 = vmatpush1.msra.mxu0 %v73
    %662 = vmatprep.subr.mxu0 0.0
    %663 = vmatpush1.msra.mxu0 %v74
    %664 = vmatprep.subr.mxu0 0.0
    %665 = vmatpush1.msra.mxu0 0.0
    %666 = vmatprep.subr.mxu0 0.0
    %667 = vmatpush1.msra.mxu0 0.0
    %668 = vmatprep.subr.mxu0 0.0
    %669 = vmatpush1.msra.mxu0 0.0
    %670 = vmatprep.subr.mxu0 0.0
    %671 = vmatpush1.msra.mxu0 0.0
    %672 = vmatprep.subr.mxu0 0.0
    %673 = vmatpush1.msra.mxu0 0.0
    %674 = vmatprep.subr.mxu0 0.0
    %675 = vmatpush1.msra.mxu0 0.0
    %676 = vmatprep.subr.mxu0 0.0
    %677 = vmatpush1.msra.mxu0 0.0
    %678 = vmatprep.subr.mxu0 0.0
    %679 = vmatpush1.msra.mxu0 0.0
    %680 = vmatprep.subr.mxu0 0.0
    %681 = vmatpush1.msra.mxu0 0.0
    %682 = vmatprep.subr.mxu0 0.0
    %683 = vmatpush1.msra.mxu0 0.0
    %684 = vmatprep.subr.mxu0 0.0
    %685 = vmatpush1.msra.mxu0 0.0
    %686 = vmatprep.subr.mxu0 0.0
    %687 = vmatpush1.msra.mxu0 0.0
    %688 = vmatprep.subr.mxu0 0.0
    %689 = vmatpush1.msra.mxu0 0.0
    %690 = vmatprep.subr.mxu0 0.0
    %691 = vmatpush1.msra.mxu0 0.0
    %692 = vmatprep.subr.mxu0 0.0
    %693 = vmatpush1.msra.mxu0 0.0
    %694 = vmatprep.subr.mxu0 0.0
    %695 = vmatpush1.msra.mxu0 0.0
    %696 = vmatprep.subr.mxu0 0.0
    %697 = vmatpush1.msra.mxu0 0.0
    %698 = vmatprep.subr.mxu0 0.0
    %699 = vmatpush1.msra.mxu0 0.0
    %700 = vmatprep.subr.mxu0 0.0
    %701 = vmatpush1.msra.mxu0 0.0
    %702 = vmatprep.subr.mxu0 0.0
    %703 = vmatpush1.msra.mxu0 0.0
    %704 = vmatprep.subr.mxu0 0.0
    %705 = vmatpush1.msra.mxu0 0.0
    %706 = vmatprep.subr.mxu0 0.0
    %707 = vmatpush1.msra.mxu0 0.0
    %708 = vmatprep.subr.mxu0 0.0
    %709 = vmatpush1.msra.mxu0 0.0
    %710 = vmatprep.subr.mxu0 0.0
    %711 = vmatpush1.msra.mxu0 0.0
    %712 = vmatprep.subr.mxu0 0.0
    %713 = vmatpush1.msra.mxu0 0.0
    %714 = vmatprep.subr.mxu0 0.0
    %715 = vmatpush1.msra.mxu0 0.0
    %716 = vmatprep.subr.mxu0 0.0
    %717 = vmatpush1.msra.mxu0 0.0
    %718 = vmatprep.subr.mxu0 0.0
    %719 = vmatpush1.msra.mxu0 0.0
    %720 = vmatprep.mubr.f32.mxu0 0.0
    %721 = vmatmul.mubr.f32.gmra.mrb[0].mxu0 %v654
    %v722 = vpop.f32.mrb[0].mxu0
    %v723 = vadd.f32 0.0, %v722
    %v724 = vpop.f32.mrb[0].mxu0
    %725 = vdwg.mxu0
    %v726 = vadd.f32 %v650, %v723
    %v727 = vtanh.pop %v726
    %v728 = vxor.u32 %v726, 2147483648
    %v729 = vmul.f32 %v728, 1.442695
    %v730 = vpow.pop %v729
    %v731 = vadd.f32 %v730, 1.0
    %v732 = vrcp.pop %v731
    %v733 = vmul.f32 1.0, %v732
    %v734 = vsel %vm232, %v727, %v733
    %v735 = vmul.f32 %v734, %v642
    %737 = vrot.lane.b32.xlu0 %v734, 64
    %v738 = vpop.permute.xlu0 %737
    %v740 = vmul.f32 %v734, %v738
    %742 = vrot.lane.b32.xlu0 %v740, 32
    %v743 = vpop.permute.xlu0 %742
    %v745 = vadd.f32 %v735, %v743
    %v746 = vtanh.pop %v745
    %748 = vrot.lane.b32.xlu0 %v746, 64
    %v749 = vpop.permute.xlu0 %748
    %v751 = vmul.f32 %v734, %v749
    %s752 = scalar_lea.vmem [#allocation2], 40
    %v753 = vld [vmem:[%s752] sm:$0xff]
    %755 = vrot.lane.b32.xlu0 %v751, 32
    %v756 = vpop.permute.xlu0 %755
    %v757 = vsel %vm236, %v756, 0
    %759 = vmatprep.subr.mxu0 0.0
    %760 = vmatpush1.msra.mxu0 %v71
    %761 = vmatprep.subr.mxu0 0.0
    %762 = vmatpush1.msra.mxu0 %v72
    %763 = vmatprep.subr.mxu0 0.0
    %764 = vmatpush1.msra.mxu0 %v73
    %765 = vmatprep.subr.mxu0 0.0
    %766 = vmatpush1.msra.mxu0 %v74
    %767 = vmatprep.subr.mxu0 0.0
    %768 = vmatpush1.msra.mxu0 0.0
    %769 = vmatprep.subr.mxu0 0.0
    %770 = vmatpush1.msra.mxu0 0.0
    %771 = vmatprep.subr.mxu0 0.0
    %772 = vmatpush1.msra.mxu0 0.0
    %773 = vmatprep.subr.mxu0 0.0
    %774 = vmatpush1.msra.mxu0 0.0
    %775 = vmatprep.subr.mxu0 0.0
    %776 = vmatpush1.msra.mxu0 0.0
    %777 = vmatprep.subr.mxu0 0.0
    %778 = vmatpush1.msra.mxu0 0.0
    %779 = vmatprep.subr.mxu0 0.0
    %780 = vmatpush1.msra.mxu0 0.0
    %781 = vmatprep.subr.mxu0 0.0
    %782 = vmatpush1.msra.mxu0 0.0
    %783 = vmatprep.subr.mxu0 0.0
    %784 = vmatpush1.msra.mxu0 0.0
    %785 = vmatprep.subr.mxu0 0.0
    %786 = vmatpush1.msra.mxu0 0.0
    %787 = vmatprep.subr.mxu0 0.0
    %788 = vmatpush1.msra.mxu0 0.0
    %789 = vmatprep.subr.mxu0 0.0
    %790 = vmatpush1.msra.mxu0 0.0
    %791 = vmatprep.subr.mxu0 0.0
    %792 = vmatpush1.msra.mxu0 0.0
    %793 = vmatprep.subr.mxu0 0.0
    %794 = vmatpush1.msra.mxu0 0.0
    %795 = vmatprep.subr.mxu0 0.0
    %796 = vmatpush1.msra.mxu0 0.0
    %797 = vmatprep.subr.mxu0 0.0
    %798 = vmatpush1.msra.mxu0 0.0
    %799 = vmatprep.subr.mxu0 0.0
    %800 = vmatpush1.msra.mxu0 0.0
    %801 = vmatprep.subr.mxu0 0.0
    %802 = vmatpush1.msra.mxu0 0.0
    %803 = vmatprep.subr.mxu0 0.0
    %804 = vmatpush1.msra.mxu0 0.0
    %805 = vmatprep.subr.mxu0 0.0
    %806 = vmatpush1.msra.mxu0 0.0
    %807 = vmatprep.subr.mxu0 0.0
    %808 = vmatpush1.msra.mxu0 0.0
    %809 = vmatprep.subr.mxu0 0.0
    %810 = vmatpush1.msra.mxu0 0.0
    %811 = vmatprep.subr.mxu0 0.0
    %812 = vmatpush1.msra.mxu0 0.0
    %813 = vmatprep.subr.mxu0 0.0
    %814 = vmatpush1.msra.mxu0 0.0
    %815 = vmatprep.subr.mxu0 0.0
    %816 = vmatpush1.msra.mxu0 0.0
    %817 = vmatprep.subr.mxu0 0.0
    %818 = vmatpush1.msra.mxu0 0.0
    %819 = vmatprep.subr.mxu0 0.0
    %820 = vmatpush1.msra.mxu0 0.0
    %821 = vmatprep.subr.mxu0 0.0
    %822 = vmatpush1.msra.mxu0 0.0
    %823 = vmatprep.mubr.f32.mxu0 0.0
    %824 = vmatmul.mubr.f32.gmra.mrb[0].mxu0 %v757
    %v825 = vpop.f32.mrb[0].mxu0
    %v826 = vadd.f32 0.0, %v825
    %v827 = vpop.f32.mrb[0].mxu0
    %828 = vdwg.mxu0
    %v829 = vadd.f32 %v753, %v826
    %v830 = vtanh.pop %v829
    %v831 = vxor.u32 %v829, 2147483648
    %v832 = vmul.f32 %v831, 1.442695
    %v833 = vpow.pop %v832
    %v834 = vadd.f32 %v833, 1.0
    %v835 = vrcp.pop %v834
    %v836 = vmul.f32 1.0, %v835
    %v837 = vsel %vm232, %v830, %v836
    %v838 = vmul.f32 %v837, %v745
    %840 = vrot.lane.b32.xlu0 %v837, 64
    %v841 = vpop.permute.xlu0 %840
    %v843 = vmul.f32 %v837, %v841
    %845 = vrot.lane.b32.xlu0 %v843, 32
    %v846 = vpop.permute.xlu0 %845
    %v848 = vadd.f32 %v838, %v846
    %v849 = vtanh.pop %v848
    %851 = vrot.lane.b32.xlu0 %v849, 64
    %v852 = vpop.permute.xlu0 %851
    %v854 = vmul.f32 %v837, %v852
    %s855 = scalar_lea.vmem [#allocation2], 48
    %v856 = vld [vmem:[%s855] sm:$0xff]
    %858 = vrot.lane.b32.xlu0 %v854, 32
    %v859 = vpop.permute.xlu0 %858
    %v860 = vsel %vm236, %v859, 0
    %862 = vmatprep.subr.mxu0 0.0
    %863 = vmatpush1.msra.mxu0 %v71
    %864 = vmatprep.subr.mxu0 0.0
    %865 = vmatpush1.msra.mxu0 %v72
    %866 = vmatprep.subr.mxu0 0.0
    %867 = vmatpush1.msra.mxu0 %v73
    %868 = vmatprep.subr.mxu0 0.0
    %869 = vmatpush1.msra.mxu0 %v74
    %870 = vmatprep.subr.mxu0 0.0
    %871 = vmatpush1.msra.mxu0 0.0
    %872 = vmatprep.subr.mxu0 0.0
    %873 = vmatpush1.msra.mxu0 0.0
    %874 = vmatprep.subr.mxu0 0.0
    %875 = vmatpush1.msra.mxu0 0.0
    %876 = vmatprep.subr.mxu0 0.0
    %877 = vmatpush1.msra.mxu0 0.0
    %878 = vmatprep.subr.mxu0 0.0
    %879 = vmatpush1.msra.mxu0 0.0
    %880 = vmatprep.subr.mxu0 0.0
    %881 = vmatpush1.msra.mxu0 0.0
    %882 = vmatprep.subr.mxu0 0.0
    %883 = vmatpush1.msra.mxu0 0.0
    %884 = vmatprep.subr.mxu0 0.0
    %885 = vmatpush1.msra.mxu0 0.0
    %886 = vmatprep.subr.mxu0 0.0
    %887 = vmatpush1.msra.mxu0 0.0
    %888 = vmatprep.subr.mxu0 0.0
    %889 = vmatpush1.msra.mxu0 0.0
    %890 = vmatprep.subr.mxu0 0.0
    %891 = vmatpush1.msra.mxu0 0.0
    %892 = vmatprep.subr.mxu0 0.0
    %893 = vmatpush1.msra.mxu0 0.0
    %894 = vmatprep.subr.mxu0 0.0
    %895 = vmatpush1.msra.mxu0 0.0
    %896 = vmatprep.subr.mxu0 0.0
    %897 = vmatpush1.msra.mxu0 0.0
    %898 = vmatprep.subr.mxu0 0.0
    %899 = vmatpush1.msra.mxu0 0.0
    %900 = vmatprep.subr.mxu0 0.0
    %901 = vmatpush1.msra.mxu0 0.0
    %902 = vmatprep.subr.mxu0 0.0
    %903 = vmatpush1.msra.mxu0 0.0
    %904 = vmatprep.subr.mxu0 0.0
    %905 = vmatpush1.msra.mxu0 0.0
    %906 = vmatprep.subr.mxu0 0.0
    %907 = vmatpush1.msra.mxu0 0.0
    %908 = vmatprep.subr.mxu0 0.0
    %909 = vmatpush1.msra.mxu0 0.0
    %910 = vmatprep.subr.mxu0 0.0
    %911 = vmatpush1.msra.mxu0 0.0
    %912 = vmatprep.subr.mxu0 0.0
    %913 = vmatpush1.msra.mxu0 0.0
    %914 = vmatprep.subr.mxu0 0.0
    %915 = vmatpush1.msra.mxu0 0.0
    %916 = vmatprep.subr.mxu0 0.0
    %917 = vmatpush1.msra.mxu0 0.0
    %918 = vmatprep.subr.mxu0 0.0
    %919 = vmatpush1.msra.mxu0 0.0
    %920 = vmatprep.subr.mxu0 0.0
    %921 = vmatpush1.msra.mxu0 0.0
    %922 = vmatprep.subr.mxu0 0.0
    %923 = vmatpush1.msra.mxu0 0.0
    %924 = vmatprep.subr.mxu0 0.0
    %925 = vmatpush1.msra.mxu0 0.0
    %926 = vmatprep.mubr.f32.mxu0 0.0
    %927 = vmatmul.mubr.f32.gmra.mrb[0].mxu0 %v860
    %v928 = vpop.f32.mrb[0].mxu0
    %v929 = vadd.f32 0.0, %v928
    %v930 = vpop.f32.mrb[0].mxu0
    %931 = vdwg.mxu0
    %v932 = vadd.f32 %v856, %v929
    %v933 = vtanh.pop %v932
    %v934 = vxor.u32 %v932, 2147483648
    %v935 = vmul.f32 %v934, 1.442695
    %v936 = vpow.pop %v935
    %v937 = vadd.f32 %v936, 1.0
    %v938 = vrcp.pop %v937
    %v939 = vmul.f32 1.0, %v938
    %v940 = vsel %vm232, %v933, %v939
    %v941 = vmul.f32 %v940, %v848
    %943 = vrot.lane.b32.xlu0 %v940, 64
    %v944 = vpop.permute.xlu0 %943
    %v946 = vmul.f32 %v940, %v944
    %948 = vrot.lane.b32.xlu0 %v946, 32
    %v949 = vpop.permute.xlu0 %948
    %v951 = vadd.f32 %v941, %v949
    %v952 = vtanh.pop %v951
    %954 = vrot.lane.b32.xlu0 %v952, 64
    %v955 = vpop.permute.xlu0 %954
    %v957 = vmul.f32 %v940, %v955
    %s958 = scalar_lea.vmem [#allocation2], 56
    %v959 = vld [vmem:[%s958] sm:$0xff]
    %961 = vrot.lane.b32.xlu0 %v957, 32
    %v962 = vpop.permute.xlu0 %961
    %v963 = vsel %vm236, %v962, 0
    %965 = vmatprep.subr.mxu0 0.0
    %966 = vmatpush1.msra.mxu0 %v71
    %967 = vmatprep.subr.mxu0 0.0
    %968 = vmatpush1.msra.mxu0 %v72
    %969 = vmatprep.subr.mxu0 0.0
    %970 = vmatpush1.msra.mxu0 %v73
    %971 = vmatprep.subr.mxu0 0.0
    %972 = vmatpush1.msra.mxu0 %v74
    %973 = vmatprep.subr.mxu0 0.0
    %974 = vmatpush1.msra.mxu0 0.0
    %975 = vmatprep.subr.mxu0 0.0
    %976 = vmatpush1.msra.mxu0 0.0
    %977 = vmatprep.subr.mxu0 0.0
    %978 = vmatpush1.msra.mxu0 0.0
    %979 = vmatprep.subr.mxu0 0.0
    %980 = vmatpush1.msra.mxu0 0.0
    %981 = vmatprep.subr.mxu0 0.0
    %982 = vmatpush1.msra.mxu0 0.0
    %983 = vmatprep.subr.mxu0 0.0
    %984 = vmatpush1.msra.mxu0 0.0
    %985 = vmatprep.subr.mxu0 0.0
    %986 = vmatpush1.msra.mxu0 0.0
    %987 = vmatprep.subr.mxu0 0.0
    %988 = vmatpush1.msra.mxu0 0.0
    %989 = vmatprep.subr.mxu0 0.0
    %990 = vmatpush1.msra.mxu0 0.0
    %991 = vmatprep.subr.mxu0 0.0
    %992 = vmatpush1.msra.mxu0 0.0
    %993 = vmatprep.subr.mxu0 0.0
    %994 = vmatpush1.msra.mxu0 0.0
    %995 = vmatprep.subr.mxu0 0.0
    %996 = vmatpush1.msra.mxu0 0.0
    %997 = vmatprep.subr.mxu0 0.0
    %998 = vmatpush1.msra.mxu0 0.0
    %999 = vmatprep.subr.mxu0 0.0
    %1000 = vmatpush1.msra.mxu0 0.0
    %1001 = vmatprep.subr.mxu0 0.0
    %1002 = vmatpush1.msra.mxu0 0.0
    %1003 = vmatprep.subr.mxu0 0.0
    %1004 = vmatpush1.msra.mxu0 0.0
    %1005 = vmatprep.subr.mxu0 0.0
    %1006 = vmatpush1.msra.mxu0 0.0
    %1007 = vmatprep.subr.mxu0 0.0
    %1008 = vmatpush1.msra.mxu0 0.0
    %1009 = vmatprep.subr.mxu0 0.0
    %1010 = vmatpush1.msra.mxu0 0.0
    %1011 = vmatprep.subr.mxu0 0.0
    %1012 = vmatpush1.msra.mxu0 0.0
    %1013 = vmatprep.subr.mxu0 0.0
    %1014 = vmatpush1.msra.mxu0 0.0
    %1015 = vmatprep.subr.mxu0 0.0
    %1016 = vmatpush1.msra.mxu0 0.0
    %1017 = vmatprep.subr.mxu0 0.0
    %1018 = vmatpush1.msra.mxu0 0.0
    %1019 = vmatprep.subr.mxu0 0.0
    %1020 = vmatpush1.msra.mxu0 0.0
    %1021 = vmatprep.subr.mxu0 0.0
    %1022 = vmatpush1.msra.mxu0 0.0
    %1023 = vmatprep.subr.mxu0 0.0
    %1024 = vmatpush1.msra.mxu0 0.0
    %1025 = vmatprep.subr.mxu0 0.0
    %1026 = vmatpush1.msra.mxu0 0.0
    %1027 = vmatprep.subr.mxu0 0.0
    %1028 = vmatpush1.msra.mxu0 0.0
    %1029 = vmatprep.mubr.f32.mxu0 0.0
    %1030 = vmatmul.mubr.f32.gmra.mrb[0].mxu0 %v963
    %v1031 = vpop.f32.mrb[0].mxu0
    %v1032 = vadd.f32 0.0, %v1031
    %v1033 = vpop.f32.mrb[0].mxu0
    %1034 = vdwg.mxu0
    %v1035 = vadd.f32 %v959, %v1032
    %v1036 = vtanh.pop %v1035
    %v1037 = vxor.u32 %v1035, 2147483648
    %v1038 = vmul.f32 %v1037, 1.442695
    %v1039 = vpow.pop %v1038
    %v1040 = vadd.f32 %v1039, 1.0
    %v1041 = vrcp.pop %v1040
    %v1042 = vmul.f32 1.0, %v1041
    %v1043 = vsel %vm232, %v1036, %v1042
    %v1044 = vmul.f32 %v1043, %v951
    %1046 = vrot.lane.b32.xlu0 %v1043, 64
    %v1047 = vpop.permute.xlu0 %1046
    %v1049 = vmul.f32 %v1043, %v1047
    %1051 = vrot.lane.b32.xlu0 %v1049, 32
    %v1052 = vpop.permute.xlu0 %1051
    %v1054 = vadd.f32 %v1044, %v1052
    %v1055 = vtanh.pop %v1054
    %1057 = vrot.lane.b32.xlu0 %v1055, 64
    %v1058 = vpop.permute.xlu0 %1057
    %v1060 = vmul.f32 %v1043, %v1058
    %1062 = vrot.lane.b32.xlu0 %v1060, 32
    %v1063 = vpop.permute.xlu0 %1062
    %1065 = vst.msk [vmem:[#allocation9] sm:$0xff] %vm236, %v1063
    %1067 = vrot.lane.b32.xlu0 %v1054, 96
    %v1068 = vpop.permute.xlu0 %1067
    %1070 = vst.msk [vmem:[#allocation10] sm:$0xff] %vm236, %v1068
    // Predicated region
    $region34: #{tpu_custom_call.1} parent=1 // pred_check
      _
    $region35: #{tpu_custom_call.1} parent=1 // pred_check_branch
      %1072 = sbr.rel (0) target = $region37
    $region36: #{tpu_custom_call.1} parent=1 // pred_region
      %s1074 = ssub.s32 128, 128
      %1075 = vsyncadd [#allocation5], %s1074
      %s1077 = sshll.u32 [#allocation9], 4
      %s1078 = int_to_ptr.vmem [resolvable:$true] %s1077
      %1080 = dma.vmem_to_hbm [thread:$0]  %s1078, 128, %s4, [#allocation5]
    $region37: #{tpu_custom_call.1} parent=1 // pred_fallthru
      _
    // Predicated region
    $region38: #{tpu_custom_call.1} parent=1 // pred_check
      _
    $region39: #{tpu_custom_call.1} parent=1 // pred_check_branch
      %1082 = sbr.rel (0) target = $region41
    $region40: #{tpu_custom_call.1} parent=1 // pred_region
      %s1084 = ssub.s32 128, 128
      %1085 = vsyncadd [#allocation11], %s1084
      %s1087 = sshll.u32 [#allocation10], 4
      %s1088 = int_to_ptr.vmem [resolvable:$true] %s1087
      %1090 = dma.vmem_to_hbm [thread:$0]  %s1088, 128, %s5, [#allocation11]
    $region41: #{tpu_custom_call.1} parent=1 // pred_fallthru
      _
    // Predicated region
    $region42: #{tpu_custom_call.1} parent=1 // pred_check
      _
    $region43: #{tpu_custom_call.1} parent=1 // pred_check_branch
      %1092 = sbr.rel (0) target = $region45
    $region44: #{tpu_custom_call.1} parent=1 // pred_region
      %1093 = dma.done [#allocation5], 128
    $region45: #{tpu_custom_call.1} parent=1 // pred_fallthru
      _
    // Predicated region
    $region46: #{tpu_custom_call.1} parent=1 // pred_check
      _
    $region47: #{tpu_custom_call.1} parent=1 // pred_check_branch
      %1095 = sbr.rel (0) target = $region49
    $region48: #{tpu_custom_call.1} parent=1 // pred_region
      %1096 = dma.done [#allocation11], 128
    $region49: #{tpu_custom_call.1} parent=1 // pred_fallthru
      _
    %1097 = vsyncpa [#allocation4], 1
    %1098 = vsyncpa [#allocation7], 1
    %1099 = vsyncpa [#allocation5], 1
    %1100 = vsyncpa [#allocation11], 1

// kernel: tpu_custom_call.1
$region0: #{tpu_custom_call.1}
  #allocation0 [shape = 'u32[]', space=smem, size = 0x4, offset = 0x4, fixed_abs, tag = 'smem constant byte address 0x4 - core index']
  #allocation1 [shape = 'u32[144,128]{1,0:T(1,128)}', space=vmem, size = 0x12000, scoped, tag = 'internal scratch']
  #allocation2 [shape = 'f32[8,8,128]{2,1,0:T(8,128)}', space=vmem, size = 0x8000, scoped, tag = 'scratch operand']
  %s0 = inlined_call_operand.hbm [shape: f32[8,8,16], index: 0, kind: input, shape index: {}]
  %s1 = inlined_call_operand.hbm [shape: f32[16,128], index: 1, kind: input, shape index: {}]
  %s2 = inlined_call_operand.hbm [shape: f32[32,128], index: 2, kind: input, shape index: {}]
  %s3 = inlined_call_operand.vmem [shape: f32[1,128], index: 3, kind: input, shape index: {}]
  %s4 = inlined_call_operand.hbm [shape: f32[1,8,32], index: 4, kind: output, shape index: {0}]
  %s5 = inlined_call_operand.hbm [shape: f32[1,8,32], index: 5, kind: output, shape index: {1}]
  %6 = xla_tuple %s4, %s5
  %s7 = sld [smem:[#allocation0]]
  $region50: #{tpu_custom_call.1} parent=0
    _
  %s9 = ssub.s32 1, %s7
  %s10 = scalar_select 0, %s9, %s7
  $region1: #{tpu_custom_call.1} parent=0
    #allocation3 [shape = 'u8[32768]{0}', space=vmem, size = 0x8000, scoped, tag = 'input window, operand 0, single buffered']
    #allocation4 [shape = 's32[1]{0}', space=sflag, size = 0x4, scoped, tag = 'scoped memory for tpu_custom_call.1']
    #allocation5 [shape = 's32[1]{0}', space=sflag, size = 0x4, scoped, tag = 'scoped memory for tpu_custom_call.1']
    #allocation6 [shape = 'u8[8192]{0}', space=vmem, size = 0x2000, scoped, tag = 'input window, operand 1, single buffered']
    #allocation7 [shape = 's32[1]{0}', space=sflag, size = 0x4, scoped, tag = 'scoped memory for tpu_custom_call.1']
    #allocation8 [shape = 'u8[16384]{0}', space=vmem, size = 0x4000, scoped, tag = 'input window, operand 2, single buffered']
    #allocation9 [shape = 'u8[4096]{0}', space=vmem, size = 0x1000, scoped, tag = 'output window, operand 0, single buffered']
    #allocation10 [shape = 'u8[4096]{0}', space=vmem, size = 0x1000, scoped, tag = 'output window, operand 1, single buffered']
    #allocation11 [shape = 's32[1]{0}', space=sflag, size = 0x4, scoped, tag = 'scoped memory for tpu_custom_call.1']
    %11 = vsyncpa [#allocation4], 0
    %12 = vsyncpa [#allocation7], 0
    %13 = vsyncpa [#allocation5], 0
    %14 = vsyncpa [#allocation11], 0
    // Predicated region
    $region2: #{tpu_custom_call.1} parent=1 // pred_check
      _
    $region3: #{tpu_custom_call.1} parent=1 // pred_check_branch
      %16 = sbr.rel (0) target = $region5
    $region4: #{tpu_custom_call.1} parent=1 // pred_region
      %s18 = ssub.s32 1024, 1024
      %19 = vsyncadd [#allocation4], %s18
      %s20 = sshll.u32 [#allocation3], 4
      %s21 = int_to_ptr.vmem [resolvable:$true] %s20
      %26 = dma.hbm_to_vmem [thread:$0]  %s0, 1024, %s21, [#allocation4], 128, 128, 8
    $region5: #{tpu_custom_call.1} parent=1 // pred_fallthru
      _
    // Predicated region
    $region6: #{tpu_custom_call.1} parent=1 // pred_check
      _
    $region7: #{tpu_custom_call.1} parent=1 // pred_check_branch
      %28 = sbr.rel (0) target = $region9
    $region8: #{tpu_custom_call.1} parent=1 // pred_region
      %s30 = ssub.s32 256, 256
      %31 = vsyncadd [#allocation7], %s30
      %s32 = sshll.u32 [#allocation6], 4
      %s33 = int_to_ptr.vmem [resolvable:$true] %s32
      %38 = dma.hbm_to_vmem [thread:$0]  %s1, 256, %s33, [#allocation7], 128, 128, 8
    $region9: #{tpu_custom_call.1} parent=1 // pred_fallthru
      _
    // Predicated region
    $region10: #{tpu_custom_call.1} parent=1 // pred_check
      _
    $region11: #{tpu_custom_call.1} parent=1 // pred_check_branch
      %40 = sbr.rel (0) target = $region13
    $region12: #{tpu_custom_call.1} parent=1 // pred_region
      %s42 = ssub.s32 512, 512
      %43 = vsyncadd [#allocation7], %s42
      %s44 = sshll.u32 [#allocation8], 4
      %s45 = int_to_ptr.vmem [resolvable:$true] %s44
      %50 = dma.hbm_to_vmem [thread:$0]  %s2, 512, %s45, [#allocation7], 128, 128, 8
    $region13: #{tpu_custom_call.1} parent=1 // pred_fallthru
      _
    // Predicated region
    $region14: #{tpu_custom_call.1} parent=1 // pred_check
      _
    $region15: #{tpu_custom_call.1} parent=1 // pred_check_branch
      %52 = sbr.rel (0) target = $region17
    $region16: #{tpu_custom_call.1} parent=1 // pred_region
      _
    $region17: #{tpu_custom_call.1} parent=1 // pred_fallthru
      _
    // Predicated region
    $region18: #{tpu_custom_call.1} parent=1 // pred_check
      _
    $region19: #{tpu_custom_call.1} parent=1 // pred_check_branch
      %54 = sbr.rel (0) target = $region21
    $region20: #{tpu_custom_call.1} parent=1 // pred_region
      %55 = dma.done [#allocation4], 1024
    $region21: #{tpu_custom_call.1} parent=1 // pred_fallthru
      _
    // Predicated region
    $region22: #{tpu_custom_call.1} parent=1 // pred_check
      _
    $region23: #{tpu_custom_call.1} parent=1 // pred_check_branch
      %57 = sbr.rel (0) target = $region25
    $region24: #{tpu_custom_call.1} parent=1 // pred_region
      %58 = dma.done [#allocation7], 256
    $region25: #{tpu_custom_call.1} parent=1 // pred_fallthru
      _
    // Predicated region
    $region26: #{tpu_custom_call.1} parent=1 // pred_check
      _
    $region27: #{tpu_custom_call.1} parent=1 // pred_check_branch
      %60 = sbr.rel (0) target = $region29
    $region28: #{tpu_custom_call.1} parent=1 // pred_region
      %61 = dma.done [#allocation7], 512
    $region29: #{tpu_custom_call.1} parent=1 // pred_fallthru
      _
    %p62 = scmp.eq.s32.totalorder 0, 0
    // Predicated region
    $region30: #{tpu_custom_call.1} parent=1 // pred_check
      %p63 = pneg %p62
    $region31: #{tpu_custom_call.1} parent=1 // pred_check_branch
      %65 = sbr.rel (%p63) target = $region33
    $region32: #{tpu_custom_call.1} parent=1 // pred_region
      %vm66 = vcmask 261120
      %67 = vst.msk [vmem:[#allocation9] sm:$0xff] %vm66, 0.0
      %68 = vst.msk [vmem:[#allocation10] sm:$0xff] %vm66, 0.0
    $region33: #{tpu_custom_call.1} parent=1 // pred_fallthru
      _
    %v69 = vld [vmem:[#allocation6] sm:$0xff]
    %v70 = vld [vmem:[#allocation6 + $0x8] sm:$0xff]
    %v71 = vld [vmem:[#allocation8] sm:$0xff]
    %v72 = vld [vmem:[#allocation8 + $0x8] sm:$0xff]
    %v73 = vld [vmem:[#allocation8 + $0x10] sm:$0xff]
    %v74 = vld [vmem:[#allocation8 + $0x18] sm:$0xff]
    %v75 = vld [vmem:[%s3] sm:$0x1]
    %v76 = vld [vmem:[#allocation3] sm:$0xff]
    %v77 = vld [vmem:[#allocation3 + $0x8] sm:$0xff]
    %v78 = vld [vmem:[#allocation3 + $0x10] sm:$0xff]
    %v79 = vld [vmem:[#allocation3 + $0x18] sm:$0xff]
    %v80 = vld [vmem:[#allocation3 + $0x20] sm:$0xff]
    %v81 = vld [vmem:[#allocation3 + $0x28] sm:$0xff]
    %v82 = vld [vmem:[#allocation3 + $0x30] sm:$0xff]
    %v83 = vld [vmem:[#allocation3 + $0x38] sm:$0xff]
    %v85 = vlaneseq
    %v86 = vshrl.u32 %v85, 7
    %v87 = vsub.s32 0, %v86
    %v88 = vrot.slane %v75, %v87
    %vm90 = vcmask 130048
    %v92 = vsel %vm90, %v76, 0
    %v95 = vsel %vm90, %v77, 0
    %v98 = vsel %vm90, %v78, 0
    %v101 = vsel %vm90, %v79, 0
    %v104 = vsel %vm90, %v80, 0
    %v107 = vsel %vm90, %v81, 0
    %v110 = vsel %vm90, %v82, 0
    %v113 = vsel %vm90, %v83, 0
    %115 = vmatprep.subr.mxu0 0.0
    %116 = vmatpush1.msra.mxu0 %v69
    %117 = vmatprep.subr.mxu0 0.0
    %118 = vmatpush1.msra.mxu0 %v70
    %119 = vmatprep.subr.mxu0 0.0
    %120 = vmatpush1.msra.mxu0 0.0
    %121 = vmatprep.subr.mxu0 0.0
    %122 = vmatpush1.msra.mxu0 0.0
    %123 = vmatprep.subr.mxu0 0.0
    %124 = vmatpush1.msra.mxu0 0.0
    %125 = vmatprep.subr.mxu0 0.0
    %126 = vmatpush1.msra.mxu0 0.0
    %127 = vmatprep.subr.mxu0 0.0
    %128 = vmatpush1.msra.mxu0 0.0
    %129 = vmatprep.subr.mxu0 0.0
    %130 = vmatpush1.msra.mxu0 0.0
    %131 = vmatprep.subr.mxu0 0.0
    %132 = vmatpush1.msra.mxu0 0.0
    %133 = vmatprep.subr.mxu0 0.0
    %134 = vmatpush1.msra.mxu0 0.0
    %135 = vmatprep.subr.mxu0 0.0
    %136 = vmatpush1.msra.mxu0 0.0
    %137 = vmatprep.subr.mxu0 0.0
    %138 = vmatpush1.msra.mxu0 0.0
    %139 = vmatprep.subr.mxu0 0.0
    %140 = vmatpush1.msra.mxu0 0.0
    %141 = vmatprep.subr.mxu0 0.0
    %142 = vmatpush1.msra.mxu0 0.0
    %143 = vmatprep.subr.mxu0 0.0
    %144 = vmatpush1.msra.mxu0 0.0
    %145 = vmatprep.subr.mxu0 0.0
    %146 = vmatpush1.msra.mxu0 0.0
    %147 = vmatprep.subr.mxu0 0.0
    %148 = vmatpush1.msra.mxu0 0.0
    %149 = vmatprep.subr.mxu0 0.0
    %150 = vmatpush1.msra.mxu0 0.0
    %151 = vmatprep.subr.mxu0 0.0
    %152 = vmatpush1.msra.mxu0 0.0
    %153 = vmatprep.subr.mxu0 0.0
    %154 = vmatpush1.msra.mxu0 0.0
    %155 = vmatprep.subr.mxu0 0.0
    %156 = vmatpush1.msra.mxu0 0.0
    %157 = vmatprep.subr.mxu0 0.0
    %158 = vmatpush1.msra.mxu0 0.0
    %159 = vmatprep.subr.mxu0 0.0
    %160 = vmatpush1.msra.mxu0 0.0
    %161 = vmatprep.subr.mxu0 0.0
    %162 = vmatpush1.msra.mxu0 0.0
    %163 = vmatprep.subr.mxu0 0.0
    %164 = vmatpush1.msra.mxu0 0.0
    %165 = vmatprep.subr.mxu0 0.0
    %166 = vmatpush1.msra.mxu0 0.0
    %167 = vmatprep.subr.mxu0 0.0
    %168 = vmatpush1.msra.mxu0 0.0
    %169 = vmatprep.subr.mxu0 0.0
    %170 = vmatpush1.msra.mxu0 0.0
    %171 = vmatprep.subr.mxu0 0.0
    %172 = vmatpush1.msra.mxu0 0.0
    %173 = vmatprep.subr.mxu0 0.0
    %174 = vmatpush1.msra.mxu0 0.0
    %175 = vmatprep.subr.mxu0 0.0
    %176 = vmatpush1.msra.mxu0 0.0
    %177 = vmatprep.subr.mxu0 0.0
    %178 = vmatpush1.msra.mxu0 0.0
    %179 = vmatprep.mubr.f32.mxu0 0.0
    %180 = vmatmul.mubr.f32.gmra.mrb[0].mxu0 %v92
    %v181 = vpop.f32.mrb[0].mxu0
    %v182 = vadd.f32 %v88, %v181
    %v183 = vpop.f32.mrb[0].mxu0
    %184 = vmatprep.mubr.f32.mxu0 0.0
    %185 = vmatmul.mubr.f32.gmra.mrb[0].mxu0 %v95
    %v186 = vpop.f32.mrb[0].mxu0
    %v187 = vadd.f32 %v88, %v186
    %v188 = vpop.f32.mrb[0].mxu0
    %189 = vmatprep.mubr.f32.mxu0 0.0
    %190 = vmatmul.mubr.f32.gmra.mrb[0].mxu0 %v98
    %v191 = vpop.f32.mrb[0].mxu0
    %v192 = vadd.f32 %v88, %v191
    %v193 = vpop.f32.mrb[0].mxu0
    %194 = vmatprep.mubr.f32.mxu0 0.0
    %195 = vmatmul.mubr.f32.gmra.mrb[0].mxu0 %v101
    %v196 = vpop.f32.mrb[0].mxu0
    %v197 = vadd.f32 %v88, %v196
    %v198 = vpop.f32.mrb[0].mxu0
    %199 = vmatprep.mubr.f32.mxu0 0.0
    %200 = vmatmul.mubr.f32.gmra.mrb[0].mxu0 %v104
    %v201 = vpop.f32.mrb[0].mxu0
    %v202 = vadd.f32 %v88, %v201
    %v203 = vpop.f32.mrb[0].mxu0
    %204 = vmatprep.mubr.f32.mxu0 0.0
    %205 = vmatmul.mubr.f32.gmra.mrb[0].mxu0 %v107
    %v206 = vpop.f32.mrb[0].mxu0
    %v207 = vadd.f32 %v88, %v206
    %v208 = vpop.f32.mrb[0].mxu0
    %209 = vmatprep.mubr.f32.mxu0 0.0
    %210 = vmatmul.mubr.f32.gmra.mrb[0].mxu0 %v110
    %v211 = vpop.f32.mrb[0].mxu0
    %v212 = vadd.f32 %v88, %v211
    %v213 = vpop.f32.mrb[0].mxu0
    %214 = vmatprep.mubr.f32.mxu0 0.0
    %215 = vmatmul.mubr.f32.gmra.mrb[0].mxu0 %v113
    %v216 = vpop.f32.mrb[0].mxu0
    %v217 = vadd.f32 %v88, %v216
    %v218 = vpop.f32.mrb[0].mxu0
    %219 = vdwg.mxu0
    %220 = vst [vmem:[#allocation2] sm:$0xff] %v182
    %221 = vst [vmem:[#allocation2 + $0x8] sm:$0xff] %v187
    %222 = vst [vmem:[#allocation2 + $0x10] sm:$0xff] %v192
    %223 = vst [vmem:[#allocation2 + $0x18] sm:$0xff] %v197
    %224 = vst [vmem:[#allocation2 + $0x20] sm:$0xff] %v202
    %225 = vst [vmem:[#allocation2 + $0x28] sm:$0xff] %v207
    %226 = vst [vmem:[#allocation2 + $0x30] sm:$0xff] %v212
    %227 = vst [vmem:[#allocation2 + $0x38] sm:$0xff] %v217
    %v228 = vlaneseq
    %v229 = vand.u32 %v228, 127
    %vm230 = vcmp.ge.s32.totalorder %v229, 64
    %vm231 = vcmp.lt.s32.totalorder %v229, 96
    %vm232 = vmand %vm230, %vm231
    %v233 = vld [vmem:[#allocation9] sm:$0xff]
    %v234 = vld [vmem:[#allocation10] sm:$0xff]
    %v235 = vld [vmem:[#allocation2] sm:$0xff]
    %vm236 = vcmask 261120
    %v238 = vsel %vm236, %v233, 0
    %240 = vmatprep.subr.mxu0 0.0
    %241 = vmatpush1.msra.mxu0 %v71
    %242 = vmatprep.subr.mxu0 0.0
    %243 = vmatpush1.msra.mxu0 %v72
    %244 = vmatprep.subr.mxu0 0.0
    %245 = vmatpush1.msra.mxu0 %v73
    %246 = vmatprep.subr.mxu0 0.0
    %247 = vmatpush1.msra.mxu0 %v74
    %248 = vmatprep.subr.mxu0 0.0
    %249 = vmatpush1.msra.mxu0 0.0
    %250 = vmatprep.subr.mxu0 0.0
    %251 = vmatpush1.msra.mxu0 0.0
    %252 = vmatprep.subr.mxu0 0.0
    %253 = vmatpush1.msra.mxu0 0.0
    %254 = vmatprep.subr.mxu0 0.0
    %255 = vmatpush1.msra.mxu0 0.0
    %256 = vmatprep.subr.mxu0 0.0
    %257 = vmatpush1.msra.mxu0 0.0
    %258 = vmatprep.subr.mxu0 0.0
    %259 = vmatpush1.msra.mxu0 0.0
    %260 = vmatprep.subr.mxu0 0.0
    %261 = vmatpush1.msra.mxu0 0.0
    %262 = vmatprep.subr.mxu0 0.0
    %263 = vmatpush1.msra.mxu0 0.0
    %264 = vmatprep.subr.mxu0 0.0
    %265 = vmatpush1.msra.mxu0 0.0
    %266 = vmatprep.subr.mxu0 0.0
    %267 = vmatpush1.msra.mxu0 0.0
    %268 = vmatprep.subr.mxu0 0.0
    %269 = vmatpush1.msra.mxu0 0.0
    %270 = vmatprep.subr.mxu0 0.0
    %271 = vmatpush1.msra.mxu0 0.0
    %272 = vmatprep.subr.mxu0 0.0
    %273 = vmatpush1.msra.mxu0 0.0
    %274 = vmatprep.subr.mxu0 0.0
    %275 = vmatpush1.msra.mxu0 0.0
    %276 = vmatprep.subr.mxu0 0.0
    %277 = vmatpush1.msra.mxu0 0.0
    %278 = vmatprep.subr.mxu0 0.0
    %279 = vmatpush1.msra.mxu0 0.0
    %280 = vmatprep.subr.mxu0 0.0
    %281 = vmatpush1.msra.mxu0 0.0
    %282 = vmatprep.subr.mxu0 0.0
    %283 = vmatpush1.msra.mxu0 0.0
    %284 = vmatprep.subr.mxu0 0.0
    %285 = vmatpush1.msra.mxu0 0.0
    %286 = vmatprep.subr.mxu0 0.0
    %287 = vmatpush1.msra.mxu0 0.0
    %288 = vmatprep.subr.mxu0 0.0
    %289 = vmatpush1.msra.mxu0 0.0
    %290 = vmatprep.subr.mxu0 0.0
    %291 = vmatpush1.msra.mxu0 0.0
    %292 = vmatprep.subr.mxu0 0.0
    %293 = vmatpush1.msra.mxu0 0.0
    %294 = vmatprep.subr.mxu0 0.0
    %295 = vmatpush1.msra.mxu0 0.0
    %296 = vmatprep.subr.mxu0 0.0
    %297 = vmatpush1.msra.mxu0 0.0
    %298 = vmatprep.subr.mxu0 0.0
    %299 = vmatpush1.msra.mxu0 0.0
    %300 = vmatprep.subr.mxu0 0.0
    %301 = vmatpush1.msra.mxu0 0.0
    %302 = vmatprep.subr.mxu0 0.0
    %303 = vmatpush1.msra.mxu0 0.0
    %304 = vmatprep.mubr.f32.mxu0 0.0
    %305 = vmatmul.mubr.f32.gmra.mrb[0].mxu0 %v238
    %v306 = vpop.f32.mrb[0].mxu0
    %v307 = vadd.f32 0.0, %v306
    %v308 = vpop.f32.mrb[0].mxu0
    %309 = vdwg.mxu0
    %v310 = vadd.f32 %v235, %v307
    %v311 = vtanh.pop %v310
    %v312 = vxor.u32 %v310, 2147483648
    %v313 = vmul.f32 %v312, 1.442695
    %v314 = vpow.pop %v313
    %v315 = vadd.f32 %v314, 1.0
    %v316 = vrcp.pop %v315
    %v317 = vmul.f32 1.0, %v316
    %v318 = vsel %vm232, %v311, %v317
    %320 = vrot.lane.b32.xlu0 %v234, 32
    %v321 = vpop.permute.xlu0 %320
    %v323 = vmul.f32 %v318, %v321
    %325 = vrot.lane.b32.xlu0 %v318, 64
    %v326 = vpop.permute.xlu0 %325
    %v328 = vmul.f32 %v318, %v326
    %330 = vrot.lane.b32.xlu0 %v328, 32
    %v331 = vpop.permute.xlu0 %330
    %v333 = vadd.f32 %v323, %v331
    %v334 = vtanh.pop %v333
    %336 = vrot.lane.b32.xlu0 %v334, 64
    %v337 = vpop.permute.xlu0 %336
    %v339 = vmul.f32 %v318, %v337
    %s340 = scalar_lea.vmem [#allocation2], 8
    %v341 = vld [vmem:[%s340] sm:$0xff]
    %343 = vrot.lane.b32.xlu0 %v339, 32
    %v344 = vpop.permute.xlu0 %343
    %v345 = vsel %vm236, %v344, 0
    %347 = vmatprep.subr.mxu0 0.0
    %348 = vmatpush1.msra.mxu0 %v71
    %349 = vmatprep.subr.mxu0 0.0
    %350 = vmatpush1.msra.mxu0 %v72
    %351 = vmatprep.subr.mxu0 0.0
    %352 = vmatpush1.msra.mxu0 %v73
    %353 = vmatprep.subr.mxu0 0.0
    %354 = vmatpush1.msra.mxu0 %v74
    %355 = vmatprep.subr.mxu0 0.0
    %356 = vmatpush1.msra.mxu0 0.0
    %357 = vmatprep.subr.mxu0 0.0
    %358 = vmatpush1.msra.mxu0 0.0
    %359 = vmatprep.subr.mxu0 0.0
    %360 = vmatpush1.msra.mxu0 0.0
    %361 = vmatprep.subr.mxu0 0.0
    %362 = vmatpush1.msra.mxu0 0.0
    %363 = vmatprep.subr.mxu0 0.0
    %364 = vmatpush1.msra.mxu0 0.0
    %365 = vmatprep.subr.mxu0 0.0
    %366 = vmatpush1.msra.mxu0 0.0
    %367 = vmatprep.subr.mxu0 0.0
    %368 = vmatpush1.msra.mxu0 0.0
    %369 = vmatprep.subr.mxu0 0.0
    %370 = vmatpush1.msra.mxu0 0.0
    %371 = vmatprep.subr.mxu0 0.0
    %372 = vmatpush1.msra.mxu0 0.0
    %373 = vmatprep.subr.mxu0 0.0
    %374 = vmatpush1.msra.mxu0 0.0
    %375 = vmatprep.subr.mxu0 0.0
    %376 = vmatpush1.msra.mxu0 0.0
    %377 = vmatprep.subr.mxu0 0.0
    %378 = vmatpush1.msra.mxu0 0.0
    %379 = vmatprep.subr.mxu0 0.0
    %380 = vmatpush1.msra.mxu0 0.0
    %381 = vmatprep.subr.mxu0 0.0
    %382 = vmatpush1.msra.mxu0 0.0
    %383 = vmatprep.subr.mxu0 0.0
    %384 = vmatpush1.msra.mxu0 0.0
    %385 = vmatprep.subr.mxu0 0.0
    %386 = vmatpush1.msra.mxu0 0.0
    %387 = vmatprep.subr.mxu0 0.0
    %388 = vmatpush1.msra.mxu0 0.0
    %389 = vmatprep.subr.mxu0 0.0
    %390 = vmatpush1.msra.mxu0 0.0
    %391 = vmatprep.subr.mxu0 0.0
    %392 = vmatpush1.msra.mxu0 0.0
    %393 = vmatprep.subr.mxu0 0.0
    %394 = vmatpush1.msra.mxu0 0.0
    %395 = vmatprep.subr.mxu0 0.0
    %396 = vmatpush1.msra.mxu0 0.0
    %397 = vmatprep.subr.mxu0 0.0
    %398 = vmatpush1.msra.mxu0 0.0
    %399 = vmatprep.subr.mxu0 0.0
    %400 = vmatpush1.msra.mxu0 0.0
    %401 = vmatprep.subr.mxu0 0.0
    %402 = vmatpush1.msra.mxu0 0.0
    %403 = vmatprep.subr.mxu0 0.0
    %404 = vmatpush1.msra.mxu0 0.0
    %405 = vmatprep.subr.mxu0 0.0
    %406 = vmatpush1.msra.mxu0 0.0
    %407 = vmatprep.subr.mxu0 0.0
    %408 = vmatpush1.msra.mxu0 0.0
    %409 = vmatprep.subr.mxu0 0.0
    %410 = vmatpush1.msra.mxu0 0.0
    %411 = vmatprep.mubr.f32.mxu0 0.0
    %412 = vmatmul.mubr.f32.gmra.mrb[0].mxu0 %v345
    %v413 = vpop.f32.mrb[0].mxu0
    %v414 = vadd.f32 0.0, %v413
    %v415 = vpop.f32.mrb[0].mxu0
    %416 = vdwg.mxu0
    %v417 = vadd.f32 %v341, %v414
    %v418 = vtanh.pop %v417
    %v419 = vxor.u32 %v417, 2147483648
    %v420 = vmul.f32 %v419, 1.442695
    %v421 = vpow.pop %v420
    %v422 = vadd.f32 %v421, 1.0
    %v423 = vrcp.pop %v422
    %v424 = vmul.f32 1.0, %v423
    %v425 = vsel %vm232, %v418, %v424
    %v426 = vmul.f32 %v425, %v333
    %428 = vrot.lane.b32.xlu0 %v425, 64
    %v429 = vpop.permute.xlu0 %428
    %v431 = vmul.f32 %v425, %v429
    %433 = vrot.lane.b32.xlu0 %v431, 32
    %v434 = vpop.permute.xlu0 %433
    %v436 = vadd.f32 %v426, %v434
    %v437 = vtanh.pop %v436
    %439 = vrot.lane.b32.xlu0 %v437, 64
    %v440 = vpop.permute.xlu0 %439
    %v442 = vmul.f32 %v425, %v440
    %s443 = scalar_lea.vmem [#allocation2], 16
    %v444 = vld [vmem:[%s443] sm:$0xff]
    %446 = vrot.lane.b32.xlu0 %v442, 32
    %v447 = vpop.permute.xlu0 %446
    %v448 = vsel %vm236, %v447, 0
    %450 = vmatprep.subr.mxu0 0.0
    %451 = vmatpush1.msra.mxu0 %v71
    %452 = vmatprep.subr.mxu0 0.0
    %453 = vmatpush1.msra.mxu0 %v72
    %454 = vmatprep.subr.mxu0 0.0
    %455 = vmatpush1.msra.mxu0 %v73
    %456 = vmatprep.subr.mxu0 0.0
    %457 = vmatpush1.msra.mxu0 %v74
    %458 = vmatprep.subr.mxu0 0.0
    %459 = vmatpush1.msra.mxu0 0.0
    %460 = vmatprep.subr.mxu0 0.0
    %461 = vmatpush1.msra.mxu0 0.0
    %462 = vmatprep.subr.mxu0 0.0
    %463 = vmatpush1.msra.mxu0 0.0
    %464 = vmatprep.subr.mxu0 0.0
    %465 = vmatpush1.msra.mxu0 0.0
    %466 = vmatprep.subr.mxu0 0.0
    %467 = vmatpush1.msra.mxu0 0.0
    %468 = vmatprep.subr.mxu0 0.0
    %469 = vmatpush1.msra.mxu0 0.0
    %470 = vmatprep.subr.mxu0 0.0
    %471 = vmatpush1.msra.mxu0 0.0
    %472 = vmatprep.subr.mxu0 0.0
    %473 = vmatpush1.msra.mxu0 0.0
    %474 = vmatprep.subr.mxu0 0.0
    %475 = vmatpush1.msra.mxu0 0.0
    %476 = vmatprep.subr.mxu0 0.0
    %477 = vmatpush1.msra.mxu0 0.0
    %478 = vmatprep.subr.mxu0 0.0
    %479 = vmatpush1.msra.mxu0 0.0
    %480 = vmatprep.subr.mxu0 0.0
    %481 = vmatpush1.msra.mxu0 0.0
    %482 = vmatprep.subr.mxu0 0.0
    %483 = vmatpush1.msra.mxu0 0.0
    %484 = vmatprep.subr.mxu0 0.0
    %485 = vmatpush1.msra.mxu0 0.0
    %486 = vmatprep.subr.mxu0 0.0
    %487 = vmatpush1.msra.mxu0 0.0
    %488 = vmatprep.subr.mxu0 0.0
    %489 = vmatpush1.msra.mxu0 0.0
    %490 = vmatprep.subr.mxu0 0.0
    %491 = vmatpush1.msra.mxu0 0.0
    %492 = vmatprep.subr.mxu0 0.0
    %493 = vmatpush1.msra.mxu0 0.0
    %494 = vmatprep.subr.mxu0 0.0
    %495 = vmatpush1.msra.mxu0 0.0
    %496 = vmatprep.subr.mxu0 0.0
    %497 = vmatpush1.msra.mxu0 0.0
    %498 = vmatprep.subr.mxu0 0.0
    %499 = vmatpush1.msra.mxu0 0.0
    %500 = vmatprep.subr.mxu0 0.0
    %501 = vmatpush1.msra.mxu0 0.0
    %502 = vmatprep.subr.mxu0 0.0
    %503 = vmatpush1.msra.mxu0 0.0
    %504 = vmatprep.subr.mxu0 0.0
    %505 = vmatpush1.msra.mxu0 0.0
    %506 = vmatprep.subr.mxu0 0.0
    %507 = vmatpush1.msra.mxu0 0.0
    %508 = vmatprep.subr.mxu0 0.0
    %509 = vmatpush1.msra.mxu0 0.0
    %510 = vmatprep.subr.mxu0 0.0
    %511 = vmatpush1.msra.mxu0 0.0
    %512 = vmatprep.subr.mxu0 0.0
    %513 = vmatpush1.msra.mxu0 0.0
    %514 = vmatprep.mubr.f32.mxu0 0.0
    %515 = vmatmul.mubr.f32.gmra.mrb[0].mxu0 %v448
    %v516 = vpop.f32.mrb[0].mxu0
    %v517 = vadd.f32 0.0, %v516
    %v518 = vpop.f32.mrb[0].mxu0
    %519 = vdwg.mxu0
    %v520 = vadd.f32 %v444, %v517
    %v521 = vtanh.pop %v520
    %v522 = vxor.u32 %v520, 2147483648
    %v523 = vmul.f32 %v522, 1.442695
    %v524 = vpow.pop %v523
    %v525 = vadd.f32 %v524, 1.0
    %v526 = vrcp.pop %v525
    %v527 = vmul.f32 1.0, %v526
    %v528 = vsel %vm232, %v521, %v527
    %v529 = vmul.f32 %v528, %v436
    %531 = vrot.lane.b32.xlu0 %v528, 64
    %v532 = vpop.permute.xlu0 %531
    %v534 = vmul.f32 %v528, %v532
    %536 = vrot.lane.b32.xlu0 %v534, 32
    %v537 = vpop.permute.xlu0 %536
    %v539 = vadd.f32 %v529, %v537
    %v540 = vtanh.pop %v539
    %542 = vrot.lane.b32.xlu0 %v540, 64
    %v543 = vpop.permute.xlu0 %542
    %v545 = vmul.f32 %v528, %v543
    %s546 = scalar_lea.vmem [#allocation2], 24
    %v547 = vld [vmem:[%s546] sm:$0xff]
    %549 = vrot.lane.b32.xlu0 %v545, 32
    %v550 = vpop.permute.xlu0 %549
    %v551 = vsel %vm236, %v550, 0
    %553 = vmatprep.subr.mxu0 0.0
    %554 = vmatpush1.msra.mxu0 %v71
    %555 = vmatprep.subr.mxu0 0.0
    %556 = vmatpush1.msra.mxu0 %v72
    %557 = vmatprep.subr.mxu0 0.0
    %558 = vmatpush1.msra.mxu0 %v73
    %559 = vmatprep.subr.mxu0 0.0
    %560 = vmatpush1.msra.mxu0 %v74
    %561 = vmatprep.subr.mxu0 0.0
    %562 = vmatpush1.msra.mxu0 0.0
    %563 = vmatprep.subr.mxu0 0.0
    %564 = vmatpush1.msra.mxu0 0.0
    %565 = vmatprep.subr.mxu0 0.0
    %566 = vmatpush1.msra.mxu0 0.0
    %567 = vmatprep.subr.mxu0 0.0
    %568 = vmatpush1.msra.mxu0 0.0
    %569 = vmatprep.subr.mxu0 0.0
    %570 = vmatpush1.msra.mxu0 0.0
    %571 = vmatprep.subr.mxu0 0.0
    %572 = vmatpush1.msra.mxu0 0.0
    %573 = vmatprep.subr.mxu0 0.0
    %574 = vmatpush1.msra.mxu0 0.0
    %575 = vmatprep.subr.mxu0 0.0
    %576 = vmatpush1.msra.mxu0 0.0
    %577 = vmatprep.subr.mxu0 0.0
    %578 = vmatpush1.msra.mxu0 0.0
    %579 = vmatprep.subr.mxu0 0.0
    %580 = vmatpush1.msra.mxu0 0.0
    %581 = vmatprep.subr.mxu0 0.0
    %582 = vmatpush1.msra.mxu0 0.0
    %583 = vmatprep.subr.mxu0 0.0
    %584 = vmatpush1.msra.mxu0 0.0
    %585 = vmatprep.subr.mxu0 0.0
    %586 = vmatpush1.msra.mxu0 0.0
    %587 = vmatprep.subr.mxu0 0.0
    %588 = vmatpush1.msra.mxu0 0.0
    %589 = vmatprep.subr.mxu0 0.0
    %590 = vmatpush1.msra.mxu0 0.0
    %591 = vmatprep.subr.mxu0 0.0
    %592 = vmatpush1.msra.mxu0 0.0
    %593 = vmatprep.subr.mxu0 0.0
    %594 = vmatpush1.msra.mxu0 0.0
    %595 = vmatprep.subr.mxu0 0.0
    %596 = vmatpush1.msra.mxu0 0.0
    %597 = vmatprep.subr.mxu0 0.0
    %598 = vmatpush1.msra.mxu0 0.0
    %599 = vmatprep.subr.mxu0 0.0
    %600 = vmatpush1.msra.mxu0 0.0
    %601 = vmatprep.subr.mxu0 0.0
    %602 = vmatpush1.msra.mxu0 0.0
    %603 = vmatprep.subr.mxu0 0.0
    %604 = vmatpush1.msra.mxu0 0.0
    %605 = vmatprep.subr.mxu0 0.0
    %606 = vmatpush1.msra.mxu0 0.0
    %607 = vmatprep.subr.mxu0 0.0
    %608 = vmatpush1.msra.mxu0 0.0
    %609 = vmatprep.subr.mxu0 0.0
    %610 = vmatpush1.msra.mxu0 0.0
    %611 = vmatprep.subr.mxu0 0.0
    %612 = vmatpush1.msra.mxu0 0.0
    %613 = vmatprep.subr.mxu0 0.0
    %614 = vmatpush1.msra.mxu0 0.0
    %615 = vmatprep.subr.mxu0 0.0
    %616 = vmatpush1.msra.mxu0 0.0
    %617 = vmatprep.mubr.f32.mxu0 0.0
    %618 = vmatmul.mubr.f32.gmra.mrb[0].mxu0 %v551
    %v619 = vpop.f32.mrb[0].mxu0
    %v620 = vadd.f32 0.0, %v619
    %v621 = vpop.f32.mrb[0].mxu0
    %622 = vdwg.mxu0
    %v623 = vadd.f32 %v547, %v620
    %v624 = vtanh.pop %v623
    %v625 = vxor.u32 %v623, 2147483648
    %v626 = vmul.f32 %v625, 1.442695
    %v627 = vpow.pop %v626
    %v628 = vadd.f32 %v627, 1.0
    %v629 = vrcp.pop %v628
    %v630 = vmul.f32 1.0, %v629
    %v631 = vsel %vm232, %v624, %v630
    %v632 = vmul.f32 %v631, %v539
    %634 = vrot.lane.b32.xlu0 %v631, 64
    %v635 = vpop.permute.xlu0 %634
    %v637 = vmul.f32 %v631, %v635
    %639 = vrot.lane.b32.xlu0 %v637, 32
    %v640 = vpop.permute.xlu0 %639
    %v642 = vadd.f32 %v632, %v640
    %v643 = vtanh.pop %v642
    %645 = vrot.lane.b32.xlu0 %v643, 64
    %v646 = vpop.permute.xlu0 %645
    %v648 = vmul.f32 %v631, %v646
    %s649 = scalar_lea.vmem [#allocation2], 32
    %v650 = vld [vmem:[%s649] sm:$0xff]
    %652 = vrot.lane.b32.xlu0 %v648, 32
    %v653 = vpop.permute.xlu0 %652
    %v654 = vsel %vm236, %v653, 0
    %656 = vmatprep.subr.mxu0 0.0
    %657 = vmatpush1.msra.mxu0 %v71
    %658 = vmatprep.subr.mxu0 0.0
    %659 = vmatpush1.msra.mxu0 %v72
    %660 = vmatprep.subr.mxu0 0.0
    %661 = vmatpush1.msra.mxu0 %v73
    %662 = vmatprep.subr.mxu0 0.0
    %663 = vmatpush1.msra.mxu0 %v74
    %664 = vmatprep.subr.mxu0 0.0
    %665 = vmatpush1.msra.mxu0 0.0
    %666 = vmatprep.subr.mxu0 0.0
    %667 = vmatpush1.msra.mxu0 0.0
    %668 = vmatprep.subr.mxu0 0.0
    %669 = vmatpush1.msra.mxu0 0.0
    %670 = vmatprep.subr.mxu0 0.0
    %671 = vmatpush1.msra.mxu0 0.0
    %672 = vmatprep.subr.mxu0 0.0
    %673 = vmatpush1.msra.mxu0 0.0
    %674 = vmatprep.subr.mxu0 0.0
    %675 = vmatpush1.msra.mxu0 0.0
    %676 = vmatprep.subr.mxu0 0.0
    %677 = vmatpush1.msra.mxu0 0.0
    %678 = vmatprep.subr.mxu0 0.0
    %679 = vmatpush1.msra.mxu0 0.0
    %680 = vmatprep.subr.mxu0 0.0
    %681 = vmatpush1.msra.mxu0 0.0
    %682 = vmatprep.subr.mxu0 0.0
    %683 = vmatpush1.msra.mxu0 0.0
    %684 = vmatprep.subr.mxu0 0.0
    %685 = vmatpush1.msra.mxu0 0.0
    %686 = vmatprep.subr.mxu0 0.0
    %687 = vmatpush1.msra.mxu0 0.0
    %688 = vmatprep.subr.mxu0 0.0
    %689 = vmatpush1.msra.mxu0 0.0
    %690 = vmatprep.subr.mxu0 0.0
    %691 = vmatpush1.msra.mxu0 0.0
    %692 = vmatprep.subr.mxu0 0.0
    %693 = vmatpush1.msra.mxu0 0.0
    %694 = vmatprep.subr.mxu0 0.0
    %695 = vmatpush1.msra.mxu0 0.0
    %696 = vmatprep.subr.mxu0 0.0
    %697 = vmatpush1.msra.mxu0 0.0
    %698 = vmatprep.subr.mxu0 0.0
    %699 = vmatpush1.msra.mxu0 0.0
    %700 = vmatprep.subr.mxu0 0.0
    %701 = vmatpush1.msra.mxu0 0.0
    %702 = vmatprep.subr.mxu0 0.0
    %703 = vmatpush1.msra.mxu0 0.0
    %704 = vmatprep.subr.mxu0 0.0
    %705 = vmatpush1.msra.mxu0 0.0
    %706 = vmatprep.subr.mxu0 0.0
    %707 = vmatpush1.msra.mxu0 0.0
    %708 = vmatprep.subr.mxu0 0.0
    %709 = vmatpush1.msra.mxu0 0.0
    %710 = vmatprep.subr.mxu0 0.0
    %711 = vmatpush1.msra.mxu0 0.0
    %712 = vmatprep.subr.mxu0 0.0
    %713 = vmatpush1.msra.mxu0 0.0
    %714 = vmatprep.subr.mxu0 0.0
    %715 = vmatpush1.msra.mxu0 0.0
    %716 = vmatprep.subr.mxu0 0.0
    %717 = vmatpush1.msra.mxu0 0.0
    %718 = vmatprep.subr.mxu0 0.0
    %719 = vmatpush1.msra.mxu0 0.0
    %720 = vmatprep.mubr.f32.mxu0 0.0
    %721 = vmatmul.mubr.f32.gmra.mrb[0].mxu0 %v654
    %v722 = vpop.f32.mrb[0].mxu0
    %v723 = vadd.f32 0.0, %v722
    %v724 = vpop.f32.mrb[0].mxu0
    %725 = vdwg.mxu0
    %v726 = vadd.f32 %v650, %v723
    %v727 = vtanh.pop %v726
    %v728 = vxor.u32 %v726, 2147483648
    %v729 = vmul.f32 %v728, 1.442695
    %v730 = vpow.pop %v729
    %v731 = vadd.f32 %v730, 1.0
    %v732 = vrcp.pop %v731
    %v733 = vmul.f32 1.0, %v732
    %v734 = vsel %vm232, %v727, %v733
    %v735 = vmul.f32 %v734, %v642
    %737 = vrot.lane.b32.xlu0 %v734, 64
    %v738 = vpop.permute.xlu0 %737
    %v740 = vmul.f32 %v734, %v738
    %742 = vrot.lane.b32.xlu0 %v740, 32
    %v743 = vpop.permute.xlu0 %742
    %v745 = vadd.f32 %v735, %v743
    %v746 = vtanh.pop %v745
    %748 = vrot.lane.b32.xlu0 %v746, 64
    %v749 = vpop.permute.xlu0 %748
    %v751 = vmul.f32 %v734, %v749
    %s752 = scalar_lea.vmem [#allocation2], 40
    %v753 = vld [vmem:[%s752] sm:$0xff]
    %755 = vrot.lane.b32.xlu0 %v751, 32
    %v756 = vpop.permute.xlu0 %755
    %v757 = vsel %vm236, %v756, 0
    %759 = vmatprep.subr.mxu0 0.0
    %760 = vmatpush1.msra.mxu0 %v71
    %761 = vmatprep.subr.mxu0 0.0
    %762 = vmatpush1.msra.mxu0 %v72
    %763 = vmatprep.subr.mxu0 0.0
    %764 = vmatpush1.msra.mxu0 %v73
    %765 = vmatprep.subr.mxu0 0.0
    %766 = vmatpush1.msra.mxu0 %v74
    %767 = vmatprep.subr.mxu0 0.0
    %768 = vmatpush1.msra.mxu0 0.0
    %769 = vmatprep.subr.mxu0 0.0
    %770 = vmatpush1.msra.mxu0 0.0
    %771 = vmatprep.subr.mxu0 0.0
    %772 = vmatpush1.msra.mxu0 0.0
    %773 = vmatprep.subr.mxu0 0.0
    %774 = vmatpush1.msra.mxu0 0.0
    %775 = vmatprep.subr.mxu0 0.0
    %776 = vmatpush1.msra.mxu0 0.0
    %777 = vmatprep.subr.mxu0 0.0
    %778 = vmatpush1.msra.mxu0 0.0
    %779 = vmatprep.subr.mxu0 0.0
    %780 = vmatpush1.msra.mxu0 0.0
    %781 = vmatprep.subr.mxu0 0.0
    %782 = vmatpush1.msra.mxu0 0.0
    %783 = vmatprep.subr.mxu0 0.0
    %784 = vmatpush1.msra.mxu0 0.0
    %785 = vmatprep.subr.mxu0 0.0
    %786 = vmatpush1.msra.mxu0 0.0
    %787 = vmatprep.subr.mxu0 0.0
    %788 = vmatpush1.msra.mxu0 0.0
    %789 = vmatprep.subr.mxu0 0.0
    %790 = vmatpush1.msra.mxu0 0.0
    %791 = vmatprep.subr.mxu0 0.0
    %792 = vmatpush1.msra.mxu0 0.0
    %793 = vmatprep.subr.mxu0 0.0
    %794 = vmatpush1.msra.mxu0 0.0
    %795 = vmatprep.subr.mxu0 0.0
    %796 = vmatpush1.msra.mxu0 0.0
    %797 = vmatprep.subr.mxu0 0.0
    %798 = vmatpush1.msra.mxu0 0.0
    %799 = vmatprep.subr.mxu0 0.0
    %800 = vmatpush1.msra.mxu0 0.0
    %801 = vmatprep.subr.mxu0 0.0
    %802 = vmatpush1.msra.mxu0 0.0
    %803 = vmatprep.subr.mxu0 0.0
    %804 = vmatpush1.msra.mxu0 0.0
    %805 = vmatprep.subr.mxu0 0.0
    %806 = vmatpush1.msra.mxu0 0.0
    %807 = vmatprep.subr.mxu0 0.0
    %808 = vmatpush1.msra.mxu0 0.0
    %809 = vmatprep.subr.mxu0 0.0
    %810 = vmatpush1.msra.mxu0 0.0
    %811 = vmatprep.subr.mxu0 0.0
    %812 = vmatpush1.msra.mxu0 0.0
    %813 = vmatprep.subr.mxu0 0.0
    %814 = vmatpush1.msra.mxu0 0.0
    %815 = vmatprep.subr.mxu0 0.0
    %816 = vmatpush1.msra.mxu0 0.0
    %817 = vmatprep.subr.mxu0 0.0
    %818 = vmatpush1.msra.mxu0 0.0
    %819 = vmatprep.subr.mxu0 0.0
    %820 = vmatpush1.msra.mxu0 0.0
    %821 = vmatprep.subr.mxu0 0.0
    %822 = vmatpush1.msra.mxu0 0.0
    %823 = vmatprep.mubr.f32.mxu0 0.0
    %824 = vmatmul.mubr.f32.gmra.mrb[0].mxu0 %v757
    %v825 = vpop.f32.mrb[0].mxu0
    %v826 = vadd.f32 0.0, %v825
    %v827 = vpop.f32.mrb[0].mxu0
    %828 = vdwg.mxu0
    %v829 = vadd.f32 %v753, %v826
    %v830 = vtanh.pop %v829
    %v831 = vxor.u32 %v829, 2147483648
    %v832 = vmul.f32 %v831, 1.442695
    %v833 = vpow.pop %v832
    %v834 = vadd.f32 %v833, 1.0
    %v835 = vrcp.pop %v834
    %v836 = vmul.f32 1.0, %v835
    %v837 = vsel %vm232, %v830, %v836
    %v838 = vmul.f32 %v837, %v745
    %840 = vrot.lane.b32.xlu0 %v837, 64
    %v841 = vpop.permute.xlu0 %840
    %v843 = vmul.f32 %v837, %v841
    %845 = vrot.lane.b32.xlu0 %v843, 32
    %v846 = vpop.permute.xlu0 %845
    %v848 = vadd.f32 %v838, %v846
    %v849 = vtanh.pop %v848
    %851 = vrot.lane.b32.xlu0 %v849, 64
    %v852 = vpop.permute.xlu0 %851
    %v854 = vmul.f32 %v837, %v852
    %s855 = scalar_lea.vmem [#allocation2], 48
    %v856 = vld [vmem:[%s855] sm:$0xff]
    %858 = vrot.lane.b32.xlu0 %v854, 32
    %v859 = vpop.permute.xlu0 %858
    %v860 = vsel %vm236, %v859, 0
    %862 = vmatprep.subr.mxu0 0.0
    %863 = vmatpush1.msra.mxu0 %v71
    %864 = vmatprep.subr.mxu0 0.0
    %865 = vmatpush1.msra.mxu0 %v72
    %866 = vmatprep.subr.mxu0 0.0
    %867 = vmatpush1.msra.mxu0 %v73
    %868 = vmatprep.subr.mxu0 0.0
    %869 = vmatpush1.msra.mxu0 %v74
    %870 = vmatprep.subr.mxu0 0.0
    %871 = vmatpush1.msra.mxu0 0.0
    %872 = vmatprep.subr.mxu0 0.0
    %873 = vmatpush1.msra.mxu0 0.0
    %874 = vmatprep.subr.mxu0 0.0
    %875 = vmatpush1.msra.mxu0 0.0
    %876 = vmatprep.subr.mxu0 0.0
    %877 = vmatpush1.msra.mxu0 0.0
    %878 = vmatprep.subr.mxu0 0.0
    %879 = vmatpush1.msra.mxu0 0.0
    %880 = vmatprep.subr.mxu0 0.0
    %881 = vmatpush1.msra.mxu0 0.0
    %882 = vmatprep.subr.mxu0 0.0
    %883 = vmatpush1.msra.mxu0 0.0
    %884 = vmatprep.subr.mxu0 0.0
    %885 = vmatpush1.msra.mxu0 0.0
    %886 = vmatprep.subr.mxu0 0.0
    %887 = vmatpush1.msra.mxu0 0.0
    %888 = vmatprep.subr.mxu0 0.0
    %889 = vmatpush1.msra.mxu0 0.0
    %890 = vmatprep.subr.mxu0 0.0
    %891 = vmatpush1.msra.mxu0 0.0
    %892 = vmatprep.subr.mxu0 0.0
    %893 = vmatpush1.msra.mxu0 0.0
    %894 = vmatprep.subr.mxu0 0.0
    %895 = vmatpush1.msra.mxu0 0.0
    %896 = vmatprep.subr.mxu0 0.0
    %897 = vmatpush1.msra.mxu0 0.0
    %898 = vmatprep.subr.mxu0 0.0
    %899 = vmatpush1.msra.mxu0 0.0
    %900 = vmatprep.subr.mxu0 0.0
    %901 = vmatpush1.msra.mxu0 0.0
    %902 = vmatprep.subr.mxu0 0.0
    %903 = vmatpush1.msra.mxu0 0.0
    %904 = vmatprep.subr.mxu0 0.0
    %905 = vmatpush1.msra.mxu0 0.0
    %906 = vmatprep.subr.mxu0 0.0
    %907 = vmatpush1.msra.mxu0 0.0
    %908 = vmatprep.subr.mxu0 0.0
    %909 = vmatpush1.msra.mxu0 0.0
    %910 = vmatprep.subr.mxu0 0.0
    %911 = vmatpush1.msra.mxu0 0.0
    %912 = vmatprep.subr.mxu0 0.0
    %913 = vmatpush1.msra.mxu0 0.0
    %914 = vmatprep.subr.mxu0 0.0
    %915 = vmatpush1.msra.mxu0 0.0
    %916 = vmatprep.subr.mxu0 0.0
    %917 = vmatpush1.msra.mxu0 0.0
    %918 = vmatprep.subr.mxu0 0.0
    %919 = vmatpush1.msra.mxu0 0.0
    %920 = vmatprep.subr.mxu0 0.0
    %921 = vmatpush1.msra.mxu0 0.0
    %922 = vmatprep.subr.mxu0 0.0
    %923 = vmatpush1.msra.mxu0 0.0
    %924 = vmatprep.subr.mxu0 0.0
    %925 = vmatpush1.msra.mxu0 0.0
    %926 = vmatprep.mubr.f32.mxu0 0.0
    %927 = vmatmul.mubr.f32.gmra.mrb[0].mxu0 %v860
    %v928 = vpop.f32.mrb[0].mxu0
    %v929 = vadd.f32 0.0, %v928
    %v930 = vpop.f32.mrb[0].mxu0
    %931 = vdwg.mxu0
    %v932 = vadd.f32 %v856, %v929
    %v933 = vtanh.pop %v932
    %v934 = vxor.u32 %v932, 2147483648
    %v935 = vmul.f32 %v934, 1.442695
    %v936 = vpow.pop %v935
    %v937 = vadd.f32 %v936, 1.0
    %v938 = vrcp.pop %v937
    %v939 = vmul.f32 1.0, %v938
    %v940 = vsel %vm232, %v933, %v939
    %v941 = vmul.f32 %v940, %v848
    %943 = vrot.lane.b32.xlu0 %v940, 64
    %v944 = vpop.permute.xlu0 %943
    %v946 = vmul.f32 %v940, %v944
    %948 = vrot.lane.b32.xlu0 %v946, 32
    %v949 = vpop.permute.xlu0 %948
    %v951 = vadd.f32 %v941, %v949
    %v952 = vtanh.pop %v951
    %954 = vrot.lane.b32.xlu0 %v952, 64
    %v955 = vpop.permute.xlu0 %954
    %v957 = vmul.f32 %v940, %v955
    %s958 = scalar_lea.vmem [#allocation2], 56
    %v959 = vld [vmem:[%s958] sm:$0xff]
    %961 = vrot.lane.b32.xlu0 %v957, 32
    %v962 = vpop.permute.xlu0 %961
    %v963 = vsel %vm236, %v962, 0
    %965 = vmatprep.subr.mxu0 0.0
    %966 = vmatpush1.msra.mxu0 %v71
    %967 = vmatprep.subr.mxu0 0.0
    %968 = vmatpush1.msra.mxu0 %v72
    %969 = vmatprep.subr.mxu0 0.0
    %970 = vmatpush1.msra.mxu0 %v73
    %971 = vmatprep.subr.mxu0 0.0
    %972 = vmatpush1.msra.mxu0 %v74
    %973 = vmatprep.subr.mxu0 0.0
    %974 = vmatpush1.msra.mxu0 0.0
    %975 = vmatprep.subr.mxu0 0.0
    %976 = vmatpush1.msra.mxu0 0.0
    %977 = vmatprep.subr.mxu0 0.0
    %978 = vmatpush1.msra.mxu0 0.0
    %979 = vmatprep.subr.mxu0 0.0
    %980 = vmatpush1.msra.mxu0 0.0
    %981 = vmatprep.subr.mxu0 0.0
    %982 = vmatpush1.msra.mxu0 0.0
    %983 = vmatprep.subr.mxu0 0.0
    %984 = vmatpush1.msra.mxu0 0.0
    %985 = vmatprep.subr.mxu0 0.0
    %986 = vmatpush1.msra.mxu0 0.0
    %987 = vmatprep.subr.mxu0 0.0
    %988 = vmatpush1.msra.mxu0 0.0
    %989 = vmatprep.subr.mxu0 0.0
    %990 = vmatpush1.msra.mxu0 0.0
    %991 = vmatprep.subr.mxu0 0.0
    %992 = vmatpush1.msra.mxu0 0.0
    %993 = vmatprep.subr.mxu0 0.0
    %994 = vmatpush1.msra.mxu0 0.0
    %995 = vmatprep.subr.mxu0 0.0
    %996 = vmatpush1.msra.mxu0 0.0
    %997 = vmatprep.subr.mxu0 0.0
    %998 = vmatpush1.msra.mxu0 0.0
    %999 = vmatprep.subr.mxu0 0.0
    %1000 = vmatpush1.msra.mxu0 0.0
    %1001 = vmatprep.subr.mxu0 0.0
    %1002 = vmatpush1.msra.mxu0 0.0
    %1003 = vmatprep.subr.mxu0 0.0
    %1004 = vmatpush1.msra.mxu0 0.0
    %1005 = vmatprep.subr.mxu0 0.0
    %1006 = vmatpush1.msra.mxu0 0.0
    %1007 = vmatprep.subr.mxu0 0.0
    %1008 = vmatpush1.msra.mxu0 0.0
    %1009 = vmatprep.subr.mxu0 0.0
    %1010 = vmatpush1.msra.mxu0 0.0
    %1011 = vmatprep.subr.mxu0 0.0
    %1012 = vmatpush1.msra.mxu0 0.0
    %1013 = vmatprep.subr.mxu0 0.0
    %1014 = vmatpush1.msra.mxu0 0.0
    %1015 = vmatprep.subr.mxu0 0.0
    %1016 = vmatpush1.msra.mxu0 0.0
    %1017 = vmatprep.subr.mxu0 0.0
    %1018 = vmatpush1.msra.mxu0 0.0
    %1019 = vmatprep.subr.mxu0 0.0
    %1020 = vmatpush1.msra.mxu0 0.0
    %1021 = vmatprep.subr.mxu0 0.0
    %1022 = vmatpush1.msra.mxu0 0.0
    %1023 = vmatprep.subr.mxu0 0.0
    %1024 = vmatpush1.msra.mxu0 0.0
    %1025 = vmatprep.subr.mxu0 0.0
    %1026 = vmatpush1.msra.mxu0 0.0
    %1027 = vmatprep.subr.mxu0 0.0
    %1028 = vmatpush1.msra.mxu0 0.0
    %1029 = vmatprep.mubr.f32.mxu0 0.0
    %1030 = vmatmul.mubr.f32.gmra.mrb[0].mxu0 %v963
    %v1031 = vpop.f32.mrb[0].mxu0
    %v1032 = vadd.f32 0.0, %v1031
    %v1033 = vpop.f32.mrb[0].mxu0
    %1034 = vdwg.mxu0
    %v1035 = vadd.f32 %v959, %v1032
    %v1036 = vtanh.pop %v1035
    %v1037 = vxor.u32 %v1035, 2147483648
    %v1038 = vmul.f32 %v1037, 1.442695
    %v1039 = vpow.pop %v1038
    %v1040 = vadd.f32 %v1039, 1.0
    %v1041 = vrcp.pop %v1040
    %v1042 = vmul.f32 1.0, %v1041
    %v1043 = vsel %vm232, %v1036, %v1042
    %v1044 = vmul.f32 %v1043, %v951
    %1046 = vrot.lane.b32.xlu0 %v1043, 64
    %v1047 = vpop.permute.xlu0 %1046
    %v1049 = vmul.f32 %v1043, %v1047
    %1051 = vrot.lane.b32.xlu0 %v1049, 32
    %v1052 = vpop.permute.xlu0 %1051
    %v1054 = vadd.f32 %v1044, %v1052
    %v1055 = vtanh.pop %v1054
    %1057 = vrot.lane.b32.xlu0 %v1055, 64
    %v1058 = vpop.permute.xlu0 %1057
    %v1060 = vmul.f32 %v1043, %v1058
    %1062 = vrot.lane.b32.xlu0 %v1060, 32
    %v1063 = vpop.permute.xlu0 %1062
    %1065 = vst.msk [vmem:[#allocation9] sm:$0xff] %vm236, %v1063
    %1067 = vrot.lane.b32.xlu0 %v1054, 96
    %v1068 = vpop.permute.xlu0 %1067
    %1070 = vst.msk [vmem:[#allocation10] sm:$0xff] %vm236, %v1068
    // Predicated region
    $region34: #{tpu_custom_call.1} parent=1 // pred_check
      _
    $region35: #{tpu_custom_call.1} parent=1 // pred_check_branch
      %1072 = sbr.rel (0) target = $region37
    $region36: #{tpu_custom_call.1} parent=1 // pred_region
      %s1074 = ssub.s32 128, 128
      %1075 = vsyncadd [#allocation5], %s1074
      %s1077 = sshll.u32 [#allocation9], 4
      %s1078 = int_to_ptr.vmem [resolvable:$true] %s1077
      %1080 = dma.vmem_to_hbm [thread:$0]  %s1078, 128, %s4, [#allocation5]
    $region37: #{tpu_custom_call.1} parent=1 // pred_fallthru
      _
    // Predicated region
    $region38: #{tpu_custom_call.1} parent=1 // pred_check
      _
    $region39: #{tpu_custom_call.1} parent=1 // pred_check_branch
      %1082 = sbr.rel (0) target = $region41
    $region40: #{tpu_custom_call.1} parent=1 // pred_region
      %s1084 = ssub.s32 128, 128
      %1085 = vsyncadd [#allocation11], %s1084
      %s1087 = sshll.u32 [#allocation10], 4
      %s1088 = int_to_ptr.vmem [resolvable:$true] %s1087
      %1090 = dma.vmem_to_hbm [thread:$0]  %s1088, 128, %s5, [#allocation11]
    $region41: #{tpu_custom_call.1} parent=1 // pred_fallthru
      _
    // Predicated region
    $region42: #{tpu_custom_call.1} parent=1 // pred_check
      _
    $region43: #{tpu_custom_call.1} parent=1 // pred_check_branch
      %1092 = sbr.rel (0) target = $region45
    $region44: #{tpu_custom_call.1} parent=1 // pred_region
      %1093 = dma.done [#allocation5], 128
    $region45: #{tpu_custom_call.1} parent=1 // pred_fallthru
      _
    // Predicated region
    $region46: #{tpu_custom_call.1} parent=1 // pred_check
      _
    $region47: #{tpu_custom_call.1} parent=1 // pred_check_branch
      %1095 = sbr.rel (0) target = $region49
    $region48: #{tpu_custom_call.1} parent=1 // pred_region
      %1096 = dma.done [#allocation11], 128
    $region49: #{tpu_custom_call.1} parent=1 // pred_fallthru
      _
    %1097 = vsyncpa [#allocation4], 1
    %1098 = vsyncpa [#allocation7], 1
    %1099 = vsyncpa [#allocation5], 1
    %1100 = vsyncpa [#allocation11], 1

</llo_original>
